<compile_context>
chip_gen: v7x
topology: tpu7x:2x2x1
jax: 0.10.0
libtpu: 0.0.40
codegen_flags: <defaults>
</compile_context>

<pallas_src>
import functools
import math

import jax
import jax.numpy as jnp
from jax.experimental import pallas as pl
from jax.experimental.pallas import tpu as pltpu


def _round_up(n: int, m: int) -> int:
    return ((n + m - 1) // m) * m


# ---------------------------------------------------------------------------
# 1. Positionwise feed-forward:  fc2(relu(fc1(x)))
# ---------------------------------------------------------------------------
def _ffn_kernel(x_ref, w1_ref, b1_ref, w2_ref, b2_ref, o_ref, acc_ref):
    # x: (tm, Ep) f32   w1: (Ep, tf) bf16   b1: (1, tf) f32
    # w2: (tf, Ep) bf16 b2: (1, Ep) f32     o / acc: (tm, Ep) f32
    j = pl.program_id(1)

    @pl.when(j == 0)
    def _init():
        acc_ref[...] = jnp.zeros_like(acc_ref)

    # bf16 MXU inputs, f32 accumulation (review item: bf16 matmuls).
    x = x_ref[...].astype(jnp.bfloat16)
    h = jnp.dot(x, w1_ref[...], preferred_element_type=jnp.float32) + b1_ref[...]
    h = jnp.maximum(h, 0.0)  # ReLU is columnwise -> tiling F is exact
    acc_ref[...] += jnp.dot(h.astype(jnp.bfloat16), w2_ref[...],
                            preferred_element_type=jnp.float32)

    @pl.when(j == pl.num_programs(1) - 1)
    def _finalize():
        o_ref[...] = (acc_ref[...] + b2_ref[...]).astype(o_ref.dtype)


def ffn_forward(x, w1, b1, w2, b2, *, tm=256, tf=None, single_buffer_weights=True):
    """x: (N, L, E).  Torch-convention params: w1 (F, E), b1 (F,), w2 (E, F), b2 (E,)."""
    N, L, E = x.shape
    F = w1.shape[0]
    M = N * L
    x2 = x.reshape(M, E)

    # Lane-dense output: pad E and F up to multiples of 128 (review item).
    Ep, Fp = _round_up(E, 128), _round_up(F, 128)
    # Big row tile (review item): 256, clamped to the (padded) row count.  For
    # v7x megacore keep >=2 grid steps when M allows it.
    tm_eff = min(tm, _round_up(M, 8))
    Mp = _round_up(M, tm_eff)  # pad M instead of asserting divisibility (review item)

    # F tile: keep weights fully resident when small (v6e-style); stream F tiles
    # through the accumulator when large (v7x 64 MiB VMEM) (review item).
    if tf is None:
        tf = Fp
        if 2 * Ep * Fp * 2 > (16 << 20):        # W1 + W2 in bf16 > 16 MiB
            tf = 128
            for cand in (512, 384, 256, 128):
                if Fp % cand == 0:
                    tf = cand
                    break
    tf = min(tf, Fp)
    nf = Fp // tf

    xp = jnp.zeros((Mp, Ep), jnp.float32).at[:M, :E].set(x2.astype(jnp.float32))
    w1p = jnp.zeros((Ep, Fp), jnp.bfloat16).at[:E, :F].set(w1.T.astype(jnp.bfloat16))
    w2p = jnp.zeros((Fp, Ep), jnp.bfloat16).at[:F, :E].set(w2.T.astype(jnp.bfloat16))
    b1p = jnp.zeros((1, Fp), jnp.float32).at[0, :F].set(b1.astype(jnp.float32))
    b2p = jnp.zeros((1, Ep), jnp.float32).at[0, :E].set(b2.astype(jnp.float32))

    grid = (Mp // tm_eff, nf)

    cost = pl.CostEstimate(
        flops=4 * M * E * F,
        transcendentals=0,
        bytes_accessed=(xp.size * 4 + w1p.size * 2 + w2p.size * 2
                        + b1p.size * 4 + b2p.size * 4 + Mp * Ep * 4),
    )

    # Explicit VMEM budget (review item); upper bound assumes double buffering.
    vmem_needed = (4 * tm_eff * Ep * 4            # x + out tiles (2 buffers each)
                   + tm_eff * Ep * 4              # f32 accumulator scratch
                   + 4 * Ep * tf * 2              # W1 + W2 tiles (2 buffers, bf16)
                   + tm_eff * tf * 4              # hidden intermediate
                   + 4 * (tf + Ep) * 4)           # biases
    vmem_limit = int(min(max(2 * vmem_needed, 32 << 20), 64 << 20))

    def build(single_buffer):
        def const_spec(shape, imap):
            # Constant-index blocks -> single buffer (review item).
            if single_buffer:
                return pl.BlockSpec(shape, imap, pipeline_mode=pl.Buffered(1))
            return pl.BlockSpec(shape, imap)

        if nf == 1:  # weights fully resident -> their index never changes
            w1_spec = const_spec((Ep, tf), lambda i, j: (0, j))
            b1_spec = const_spec((1, tf), lambda i, j: (0, j))
            w2_spec = const_spec((tf, Ep), lambda i, j: (j, 0))
        else:        # streamed F tiles need double buffering to hide the DMA
            w1_spec = pl.BlockSpec((Ep, tf), lambda i, j: (0, j))
            b1_spec = pl.BlockSpec((1, tf), lambda i, j: (0, j))
            w2_spec = pl.BlockSpec((tf, Ep), lambda i, j: (j, 0))
        b2_spec = const_spec((1, Ep), lambda i, j: (0, 0))

        return pl.pallas_call(
            _ffn_kernel,
            out_shape=jax.ShapeDtypeStruct((Mp, Ep), x.dtype),
            grid_spec=pltpu.PrefetchScalarGridSpec(
                num_scalar_prefetch=0,
                grid=grid,
                in_specs=[
                    pl.BlockSpec((tm_eff, Ep), lambda i, j: (i, 0)),
                    w1_spec, b1_spec, w2_spec, b2_spec,
                ],
                out_specs=pl.BlockSpec((tm_eff, Ep), lambda i, j: (i, 0)),
                scratch_shapes=[pltpu.VMEM((tm_eff, Ep), jnp.float32)],
            ),
            compiler_params=pltpu.CompilerParams(
                dimension_semantics=("parallel", "arbitrary"),
                vmem_limit_bytes=vmem_limit,
            ),
            cost_estimate=cost,
        )

    try:
        out = build(single_buffer_weights)(xp, w1p, b1p, w2p, b2p)
    except Exception:
        # Some JAX versions reject pipeline_mode=pl.Buffered(1) on pallas_call
        # BlockSpecs; fall back to default double buffering (same semantics).
        out = build(False)(xp, w1p, b1p, w2p, b2p)

    return out[:M, :E].reshape(N, L, E)


# ---------------------------------------------------------------------------
# 2. Multi-head self-attention (one batch element per grid step)
# ---------------------------------------------------------------------------
def _mha_kernel(xh_ref, mask_ref, wq_ref, wk_ref, wv_ref, wo_ref, bo_ref, o_ref,
                *, heads, head_dim, scale):
    # xh: (H, L, D)  mask: (L, L)  wq/wk/wv: (D, D)  wo: (E, E)  bo: (1, E)  o: (L, E)
    mask = mask_ref[...]
    L = xh_ref.shape[1]
    E = wo_ref.shape[1]
    acc = jnp.zeros((L, E), jnp.float32)
    for h in range(heads):
        xh = xh_ref[h]                                                   # (L, D)
        q = jnp.dot(xh, wq_ref[...], preferred_element_type=jnp.float32)
        k = jnp.dot(xh, wk_ref[...], preferred_element_type=jnp.float32)
        v = jnp.dot(xh, wv_ref[...], preferred_element_type=jnp.float32)
        # energy = q @ k^T (contract the head dim of both operands)
        e = jax.lax.dot_general(q, k, (((1,), (1,)), ((), ())),
                                preferred_element_type=jnp.float32)      # (L, L)
        e = jnp.where(mask == 0.0, -1e20, e)   # masked_fill(mask == 0, -1e20)
        s = e * scale                          # / sqrt(embed_size), as in torch
        s = s - jnp.max(s, axis=-1, keepdims=True)
        p = jnp.exp(s)
        p = p / jnp.sum(p, axis=-1, keepdims=True)
        ctx = jnp.dot(p, v, preferred_element_type=jnp.float32)          # (L, D)
        lo = h * head_dim
        # concat-heads @ Wo^T  ==  sum_h ctx_h @ Wo^T[h*D:(h+1)*D, :]
        acc = acc + jnp.dot(ctx, wo_ref[lo:lo + head_dim, :],
                            preferred_element_type=jnp.float32)
    o_ref[...] = (acc + bo_ref[...]).astype(o_ref.dtype)


def mha_forward(x, mask_f, wq, wk, wv, wo, bo, heads):
    """x: (N, L, E); mask_f: (N, L, L) float (0 = masked). Torch-convention weights."""
    N, L, E = x.shape
    D = E // heads
    xh = x.reshape(N, L, heads, D).transpose(0, 2, 1, 3)   # (N, H, L, D)
    scale = 1.0 / math.sqrt(E)

    kernel = functools.partial(_mha_kernel, heads=heads, head_dim=D, scale=scale)
    return pl.pallas_call(
        kernel,
        out_shape=jax.ShapeDtypeStruct((N, L, E), x.dtype),
        grid_spec=pltpu.PrefetchScalarGridSpec(
            num_scalar_prefetch=0,
            grid=(N,),
            in_specs=[
                pl.BlockSpec((None, heads, L, D), lambda n: (n, 0, 0, 0)),
                pl.BlockSpec((None, L, L), lambda n: (n, 0, 0)),
                pl.BlockSpec((D, D), lambda n: (0, 0)),
                pl.BlockSpec((D, D), lambda n: (0, 0)),
                pl.BlockSpec((D, D), lambda n: (0, 0)),
                pl.BlockSpec((E, E), lambda n: (0, 0)),
                pl.BlockSpec((1, E), lambda n: (0, 0)),
            ],
            out_specs=pl.BlockSpec((None, L, E), lambda n: (n, 0, 0)),
        ),
        compiler_params=pltpu.CompilerParams(dimension_semantics=("parallel",)),
    )(xh, mask_f, wq.T, wk.T, wv.T, wo.T, bo.reshape(1, E))


# ---------------------------------------------------------------------------
# 3. Fused residual add + LayerNorm
# ---------------------------------------------------------------------------
def _add_ln_kernel(x_ref, r_ref, g_ref, b_ref, o_ref, *, eps):
    y = x_ref[...].astype(jnp.float32) + r_ref[...].astype(jnp.float32)
    mu = jnp.mean(y, axis=-1, keepdims=True)
    d = y - mu
    var = jnp.mean(d * d, axis=-1, keepdims=True)
    inv = jax.lax.rsqrt(var + eps)
    o_ref[...] = (d * inv * g_ref[...] + b_ref[...]).astype(o_ref.dtype)


def add_layernorm(x, resid, gamma, beta, *, tm=256, eps=1e-5):
    N, L, E = x.shape
    M = N * L
    x2 = x.reshape(M, E)
    r2 = resid.reshape(M, E)
    tm_eff = min(tm, _round_up(M, 8))
    Mp = _round_up(M, tm_eff)
    if Mp != M:
        x2 = jnp.pad(x2, ((0, Mp - M), (0, 0)))
        r2 = jnp.pad(r2, ((0, Mp - M), (0, 0)))
    g2 = gamma.reshape(1, E).astype(jnp.float32)
    b2 = beta.reshape(1, E).astype(jnp.float32)

    out = pl.pallas_call(
        functools.partial(_add_ln_kernel, eps=eps),
        out_shape=jax.ShapeDtypeStruct((Mp, E), x.dtype),
        grid_spec=pltpu.PrefetchScalarGridSpec(
            num_scalar_prefetch=0,
            grid=(Mp // tm_eff,),
            in_specs=[
                pl.BlockSpec((tm_eff, E), lambda i: (i, 0)),
                pl.BlockSpec((tm_eff, E), lambda i: (i, 0)),
                pl.BlockSpec((1, E), lambda i: (0, 0)),
                pl.BlockSpec((1, E), lambda i: (0, 0)),
            ],
            out_specs=pl.BlockSpec((tm_eff, E), lambda i: (i, 0)),
        ),
        compiler_params=pltpu.CompilerParams(dimension_semantics=("parallel",)),
    )(x2, r2, g2, b2)
    return out[:M].reshape(N, L, E)


# ---------------------------------------------------------------------------
# 4. Channel exchange between the two branches
# ---------------------------------------------------------------------------
def _exchange_kernel(a_ref, b_ref, m1_ref, m2_ref, o1_ref, o2_ref):
    a = a_ref[...]
    b = b_ref[...]
    m1 = m1_ref[...]   # (1, E) of exact 0.0 / 1.0
    m2 = m2_ref[...]
    o1_ref[...] = a * m1 + b * (1.0 - m1)   # keep a where |ln1.w| >= thr else take b
    o2_ref[...] = b * m2 + a * (1.0 - m2)


def channel_exchange(z0, z1, gamma2_0, gamma2_1, threshold, *, tm=256):
    N, L, E = z0.shape
    M = N * L
    a = z0.reshape(M, E)
    b = z1.reshape(M, E)
    tm_eff = min(tm, _round_up(M, 8))
    Mp = _round_up(M, tm_eff)
    if Mp != M:
        a = jnp.pad(a, ((0, Mp - M), (0, 0)))
        b = jnp.pad(b, ((0, Mp - M), (0, 0)))
    m1 = (jnp.abs(gamma2_0) >= threshold).astype(jnp.float32).reshape(1, E)
    m2 = (jnp.abs(gamma2_1) >= threshold).astype(jnp.float32).reshape(1, E)

    o0, o1 = pl.pallas_call(
        _exchange_kernel,
        out_shape=(jax.ShapeDtypeStruct((Mp, E), z0.dtype),
                   jax.ShapeDtypeStruct((Mp, E), z1.dtype)),
        grid_spec=pltpu.PrefetchScalarGridSpec(
            num_scalar_prefetch=0,
            grid=(Mp // tm_eff,),
            in_specs=[
                pl.BlockSpec((tm_eff, E), lambda i: (i, 0)),
                pl.BlockSpec((tm_eff, E), lambda i: (i, 0)),
                pl.BlockSpec((1, E), lambda i: (0, 0)),
                pl.BlockSpec((1, E), lambda i: (0, 0)),
            ],
            out_specs=[
                pl.BlockSpec((tm_eff, E), lambda i: (i, 0)),
                pl.BlockSpec((tm_eff, E), lambda i: (i, 0)),
            ],
        ),
        compiler_params=pltpu.CompilerParams(dimension_semantics=("parallel",)),
    )(a, b, m1, m2)
    return o0[:M].reshape(N, L, E), o1[:M].reshape(N, L, E)


# ---------------------------------------------------------------------------
# Full EncoderLayer forward (Pallas) and a pure-jnp reference
# ---------------------------------------------------------------------------
def encoder_layer_forward(x0, x1, mask, p, ln_threshold):
    N, L, E = x0.shape
    mask_f = jnp.broadcast_to(jnp.asarray(mask, jnp.float32), (N, 1, L, L))[:, 0]

    # Attention (weights shared between both branches, as in the torch module).
    a0 = mha_forward(x0, mask_f, p["wq"], p["wk"], p["wv"], p["wo"], p["bo"], p["heads"])
    a1 = mha_forward(x1, mask_f, p["wq"], p["wk"], p["wv"], p["wo"], p["bo"], p["heads"])

    # residual + LayerNormParallel (norm1); dropout is identity at inference.
    y0 = add_layernorm(a0, x0, p["g1_0"], p["bln1_0"])
    y1 = add_layernorm(a1, x1, p["g1_1"], p["bln1_1"])

    f0 = ffn_forward(y0, p["w1"], p["b1"], p["w2"], p["b2"])
    f1 = ffn_forward(y1, p["w1"], p["b1"], p["w2"], p["b2"])

    # The torch module applies norm1 again here (not norm2); norm2's LayerNorm
    # weights only feed the exchange gate below.
    z0 = add_layernorm(f0, y0, p["g1_0"], p["bln1_0"])
    z1 = add_layernorm(f1, y1, p["g1_1"], p["bln1_1"])

    return channel_exchange(z0, z1, p["g2_0"], p["g2_1"], ln_threshold)


def _ref_encoder_layer(x0, x1, mask, p, ln_threshold):
    E = x0.shape[-1]
    H = p["heads"]
    D = E // H

    def mha(x):
        N, L, _ = x.shape
        xh = x.reshape(N, L, H, D)
        q = jnp.einsum("nlhd,od->nlho", xh, p["wq"])
        k = jnp.einsum("nlhd,od->nlho", xh, p["wk"])
        v = jnp.einsum("nlhd,od->nlho", xh, p["wv"])
        energy = jnp.einsum("nqhd,nkhd->nhqk", q, k)
        energy = jnp.where(mask == 0, -1e20, energy)
        attn = jax.nn.softmax(energy / (E ** 0.5), axis=3)
        out = jnp.einsum("nhql,nlhd->nqhd", attn, v).reshape(N, L, E)
        return jnp.einsum("nle,oe->nlo", out, p["wo"]) + p["bo"]

    def ln(y, g, b, eps=1e-5):
        mu = jnp.mean(y, axis=-1, keepdims=True)
        var = jnp.mean((y - mu) ** 2, axis=-1, keepdims=True)
        return (y - mu) / jnp.sqrt(var + eps) * g + b

    def ffn(y):
        h = jnp.maximum(jnp.einsum("nle,fe->nlf", y, p["w1"]) + p["b1"], 0.0)
        return jnp.einsum("nlf,ef->nle", h, p["w2"]) + p["b2"]

    a0, a1 = mha(x0), mha(x1)
    y0 = ln(a0 + x0, p["g1_0"], p["bln1_0"])
    y1 = ln(a1 + x1, p["g1_1"], p["bln1_1"])
    f0, f1 = ffn(y0), ffn(y1)
    z0 = ln(f0 + y0, p["g1_0"], p["bln1_0"])
    z1 = ln(f1 + y1, p["g1_1"], p["bln1_1"])
    keep0 = jnp.abs(p["g2_0"]) >= ln_threshold
    keep1 = jnp.abs(p["g2_1"]) >= ln_threshold
    return jnp.where(keep0, z0, z1), jnp.where(keep1, z1, z0)


if __name__ == "__main__":
    N, L, E, H, F = 2, 8, 32, 4, 64
    D = E // H
    ln_threshold = 1.0

    key = jax.random.PRNGKey(0)
    ks = jax.random.split(key, 18)

    def unif(k, shape, bound):
        return jax.random.uniform(k, shape, minval=-bound, maxval=bound, dtype=jnp.float32)

    p = {
        "heads": H,
        # MultiHeadAttention (torch nn.Linear conventions: weight is (out, in))
        "wq": unif(ks[0], (D, D), 1.0 / D ** 0.5),
        "wk": unif(ks[1], (D, D), 1.0 / D ** 0.5),
        "wv": unif(ks[2], (D, D), 1.0 / D ** 0.5),
        "wo": unif(ks[3], (E, E), 1.0 / E ** 0.5),
        "bo": unif(ks[4], (E,), 1.0 / E ** 0.5),
        # PositionwiseFeedforward
        "w1": unif(ks[5], (F, E), 1.0 / E ** 0.5),
        "b1": unif(ks[6], (F,), 1.0 / E ** 0.5),
        "w2": unif(ks[7], (E, F), 1.0 / F ** 0.5),
        "b2": unif(ks[8], (E,), 1.0 / F ** 0.5),
        # LayerNormParallel norm1 (applied per branch) -- randomized for a real test
        "g1_0": 1.0 + 0.1 * jax.random.normal(ks[9], (E,), dtype=jnp.float32),
        "bln1_0": 0.1 * jax.random.normal(ks[10], (E,), dtype=jnp.float32),
        "g1_1": 1.0 + 0.1 * jax.random.normal(ks[11], (E,), dtype=jnp.float32),
        "bln1_1": 0.1 * jax.random.normal(ks[12], (E,), dtype=jnp.float32),
        # LayerNormParallel norm2 -- only its weights feed the Exchange gate
        "g2_0": jax.random.uniform(ks[13], (E,), minval=0.0, maxval=2.0, dtype=jnp.float32),
        "g2_1": jax.random.uniform(ks[14], (E,), minval=0.0, maxval=2.0, dtype=jnp.float32),
    }

    x0 = jax.random.normal(ks[15], (N, L, E), dtype=jnp.float32)
    x1 = jax.random.normal(ks[16], (N, L, E), dtype=jnp.float32)

    # Causal mask, torch-style shape (N, 1, L, L); 0 = masked out.
    mask = jnp.broadcast_to(jnp.tril(jnp.ones((L, L), jnp.float32)), (N, 1, L, L))

    o0, o1 = encoder_layer_forward(x0, x1, mask, p, ln_threshold)
    o0 = jax.block_until_ready(o0)
    o1 = jax.block_until_ready(o1)

    r0, r1 = _ref_encoder_layer(x0, x1, mask, p, ln_threshold)

    assert o0.shape == (N, L, E) and o1.shape == (N, L, E)
    # FFN matmuls run in bf16 (f32 accumulation) -> compare with a relaxed tolerance.
    assert jnp.allclose(o0, r0, atol=5e-2, rtol=5e-2), "branch 0 mismatch vs reference"
    assert jnp.allclose(o1, r1, atol=5e-2, rtol=5e-2), "branch 1 mismatch vs reference"

    print("KERNEL_OK")
</pallas_src>

<mosaic_0001>
module attributes {stable_mosaic.version = 11 : i64} {
  func.func @_mha_kernel(%arg0: i32, %arg1: memref<1x4x8x8xf32, #tpu.memory_space<vmem>>, %arg2: memref<1x8x8xf32, #tpu.memory_space<vmem>>, %arg3: memref<8x8xf32, #tpu.memory_space<vmem>>, %arg4: memref<8x8xf32, #tpu.memory_space<vmem>>, %arg5: memref<8x8xf32, #tpu.memory_space<vmem>>, %arg6: memref<32x32xf32, #tpu.memory_space<vmem>>, %arg7: memref<1x32xf32, #tpu.memory_space<vmem>>, %arg8: memref<1x8x32xf32, #tpu.memory_space<vmem>>) attributes {dimension_semantics = [#tpu.dimension_semantics<parallel>], iteration_bounds = array<i64: 2>, scalar_prefetch = 0 : i64, scratch_operands = 0 : i64, tpu.core_type = #tpu.core_type<tc>, window_params = [{transform_indices = @transform_0, window_bounds = array<i64: 1, 4, 8, 8>}, {transform_indices = @transform_1, window_bounds = array<i64: 1, 8, 8>}, {pipeline_mode = #tpu.pipeline_mode<synchronous>, transform_indices = @transform_2, window_bounds = array<i64: 8, 8>}, {pipeline_mode = #tpu.pipeline_mode<synchronous>, transform_indices = @transform_3, window_bounds = array<i64: 8, 8>}, {pipeline_mode = #tpu.pipeline_mode<synchronous>, transform_indices = @transform_4, window_bounds = array<i64: 8, 8>}, {pipeline_mode = #tpu.pipeline_mode<synchronous>, transform_indices = @transform_5, window_bounds = array<i64: 32, 32>}, {pipeline_mode = #tpu.pipeline_mode<synchronous>, transform_indices = @transform_6, window_bounds = array<i64: 1, 32>}, {transform_indices = @transform_7, window_bounds = array<i64: 1, 8, 32>}]} {
    %c0 = arith.constant 0 : index
    %c0_0 = arith.constant 0 : index
    %c0_1 = arith.constant 0 : index
    %0 = vector.load %arg2[%c0, %c0_0, %c0_1] : memref<1x8x8xf32, #tpu.memory_space<vmem>>, vector<1x8x8xf32>
    %1 = vector.shape_cast %0 : vector<1x8x8xf32> to vector<8x8xf32>
    %cst = arith.constant 0.000000e+00 : f32
    %2 = vector.broadcast %cst : f32 to vector<8x32xf32>
    %c0_2 = arith.constant 0 : index
    %c0_3 = arith.constant 0 : index
    %c0_4 = arith.constant 0 : index
    %c0_5 = arith.constant 0 : index
    %3 = vector.load %arg1[%c0_2, %c0_3, %c0_4, %c0_5] : memref<1x4x8x8xf32, #tpu.memory_space<vmem>>, vector<1x1x8x8xf32>
    %4 = vector.shape_cast %3 : vector<1x1x8x8xf32> to vector<8x8xf32>
    %c0_6 = arith.constant 0 : index
    %c0_7 = arith.constant 0 : index
    %5 = vector.load %arg3[%c0_6, %c0_7] : memref<8x8xf32, #tpu.memory_space<vmem>>, vector<8x8xf32>
    %cst_8 = arith.constant dense<0.000000e+00> : vector<8x8xf32>
    %6 = tpu.matmul %4, %5, %cst_8 {dimension_numbers = #tpu.dot_dimension_numbers<[1], [0], [0], [1], [0, 0, 1, 1], [], []>} : vector<8x8xf32>, vector<8x8xf32>, vector<8x8xf32> -> vector<8x8xf32>
    %c0_9 = arith.constant 0 : index
    %c0_10 = arith.constant 0 : index
    %7 = vector.load %arg4[%c0_9, %c0_10] : memref<8x8xf32, #tpu.memory_space<vmem>>, vector<8x8xf32>
    %cst_11 = arith.constant dense<0.000000e+00> : vector<8x8xf32>
    %8 = tpu.matmul %4, %7, %cst_11 {dimension_numbers = #tpu.dot_dimension_numbers<[1], [0], [0], [1], [0, 0, 1, 1], [], []>} : vector<8x8xf32>, vector<8x8xf32>, vector<8x8xf32> -> vector<8x8xf32>
    %c0_12 = arith.constant 0 : index
    %c0_13 = arith.constant 0 : index
    %9 = vector.load %arg5[%c0_12, %c0_13] : memref<8x8xf32, #tpu.memory_space<vmem>>, vector<8x8xf32>
    %cst_14 = arith.constant dense<0.000000e+00> : vector<8x8xf32>
    %10 = tpu.matmul %4, %9, %cst_14 {dimension_numbers = #tpu.dot_dimension_numbers<[1], [0], [0], [1], [0, 0, 1, 1], [], []>} : vector<8x8xf32>, vector<8x8xf32>, vector<8x8xf32> -> vector<8x8xf32>
    %cst_15 = arith.constant dense<0.000000e+00> : vector<8x8xf32>
    %11 = tpu.matmul %6, %8, %cst_15 {dimension_numbers = #tpu.dot_dimension_numbers<[1], [1], [0], [0], [0, 0, 1, 0], [], []>} : vector<8x8xf32>, vector<8x8xf32>, vector<8x8xf32> -> vector<8x8xf32>
    %cst_16 = arith.constant 0.000000e+00 : f32
    %12 = vector.broadcast %cst_16 : f32 to vector<8x8xf32>
    %13 = arith.cmpf oeq, %1, %12 : vector<8x8xf32>
    %cst_17 = arith.constant -1.000000e+20 : f32
    %14 = vector.broadcast %cst_17 : f32 to vector<8x8xf32>
    %15 = arith.select %13, %14, %11 : vector<8x8xi1>, vector<8x8xf32>
    %cst_18 = arith.constant 0.176776692 : f32
    %16 = vector.broadcast %cst_18 : f32 to vector<8x8xf32>
    %17 = arith.mulf %15, %16 : vector<8x8xf32>
    %cst_19 = arith.constant dense<0xFF800000> : vector<8xf32>
    %18 = vector.multi_reduction <maximumf>, %17, %cst_19 [1] : vector<8x8xf32> to vector<8xf32>
    %19 = vector.shape_cast %18 : vector<8xf32> to vector<8x1xf32>
    %20 = vector.broadcast %19 : vector<8x1xf32> to vector<8x8xf32>
    %21 = arith.subf %17, %20 : vector<8x8xf32>
    %22 = math.exp %21 : vector<8x8xf32>
    %cst_20 = arith.constant dense<0.000000e+00> : vector<8xf32>
    %23 = vector.multi_reduction <add>, %22, %cst_20 [1] : vector<8x8xf32> to vector<8xf32>
    %24 = vector.shape_cast %23 : vector<8xf32> to vector<8x1xf32>
    %25 = vector.broadcast %24 : vector<8x1xf32> to vector<8x8xf32>
    %26 = arith.divf %22, %25 : vector<8x8xf32>
    %cst_21 = arith.constant dense<0.000000e+00> : vector<8x8xf32>
    %27 = tpu.matmul %26, %10, %cst_21 {dimension_numbers = #tpu.dot_dimension_numbers<[1], [0], [0], [1], [0, 0, 1, 1], [], []>} : vector<8x8xf32>, vector<8x8xf32>, vector<8x8xf32> -> vector<8x8xf32>
    %c0_22 = arith.constant 0 : index
    %c0_23 = arith.constant 0 : index
    %28 = vector.load %arg6[%c0_22, %c0_23] : memref<32x32xf32, #tpu.memory_space<vmem>>, vector<8x32xf32>
    %cst_24 = arith.constant dense<0.000000e+00> : vector<8x32xf32>
    %29 = tpu.matmul %27, %28, %cst_24 {dimension_numbers = #tpu.dot_dimension_numbers<[1], [0], [0], [1], [0, 0, 1, 1], [], []>} : vector<8x8xf32>, vector<8x32xf32>, vector<8x32xf32> -> vector<8x32xf32>
    %30 = arith.addf %2, %29 : vector<8x32xf32>
    %c0_25 = arith.constant 0 : index
    %c1 = arith.constant 1 : index
    %c0_26 = arith.constant 0 : index
    %c0_27 = arith.constant 0 : index
    %31 = vector.load %arg1[%c0_25, %c1, %c0_26, %c0_27] : memref<1x4x8x8xf32, #tpu.memory_space<vmem>>, vector<1x1x8x8xf32>
    %32 = vector.shape_cast %31 : vector<1x1x8x8xf32> to vector<8x8xf32>
    %c0_28 = arith.constant 0 : index
    %c0_29 = arith.constant 0 : index
    %33 = vector.load %arg3[%c0_28, %c0_29] : memref<8x8xf32, #tpu.memory_space<vmem>>, vector<8x8xf32>
    %cst_30 = arith.constant dense<0.000000e+00> : vector<8x8xf32>
    %34 = tpu.matmul %32, %33, %cst_30 {dimension_numbers = #tpu.dot_dimension_numbers<[1], [0], [0], [1], [0, 0, 1, 1], [], []>} : vector<8x8xf32>, vector<8x8xf32>, vector<8x8xf32> -> vector<8x8xf32>
    %c0_31 = arith.constant 0 : index
    %c0_32 = arith.constant 0 : index
    %35 = vector.load %arg4[%c0_31, %c0_32] : memref<8x8xf32, #tpu.memory_space<vmem>>, vector<8x8xf32>
    %cst_33 = arith.constant dense<0.000000e+00> : vector<8x8xf32>
    %36 = tpu.matmul %32, %35, %cst_33 {dimension_numbers = #tpu.dot_dimension_numbers<[1], [0], [0], [1], [0, 0, 1, 1], [], []>} : vector<8x8xf32>, vector<8x8xf32>, vector<8x8xf32> -> vector<8x8xf32>
    %c0_34 = arith.constant 0 : index
    %c0_35 = arith.constant 0 : index
    %37 = vector.load %arg5[%c0_34, %c0_35] : memref<8x8xf32, #tpu.memory_space<vmem>>, vector<8x8xf32>
    %cst_36 = arith.constant dense<0.000000e+00> : vector<8x8xf32>
    %38 = tpu.matmul %32, %37, %cst_36 {dimension_numbers = #tpu.dot_dimension_numbers<[1], [0], [0], [1], [0, 0, 1, 1], [], []>} : vector<8x8xf32>, vector<8x8xf32>, vector<8x8xf32> -> vector<8x8xf32>
    %cst_37 = arith.constant dense<0.000000e+00> : vector<8x8xf32>
    %39 = tpu.matmul %34, %36, %cst_37 {dimension_numbers = #tpu.dot_dimension_numbers<[1], [1], [0], [0], [0, 0, 1, 0], [], []>} : vector<8x8xf32>, vector<8x8xf32>, vector<8x8xf32> -> vector<8x8xf32>
    %cst_38 = arith.constant 0.000000e+00 : f32
    %40 = vector.broadcast %cst_38 : f32 to vector<8x8xf32>
    %41 = arith.cmpf oeq, %1, %40 : vector<8x8xf32>
    %cst_39 = arith.constant -1.000000e+20 : f32
    %42 = vector.broadcast %cst_39 : f32 to vector<8x8xf32>
    %43 = arith.select %41, %42, %39 : vector<8x8xi1>, vector<8x8xf32>
    %cst_40 = arith.constant 0.176776692 : f32
    %44 = vector.broadcast %cst_40 : f32 to vector<8x8xf32>
    %45 = arith.mulf %43, %44 : vector<8x8xf32>
    %cst_41 = arith.constant dense<0xFF800000> : vector<8xf32>
    %46 = vector.multi_reduction <maximumf>, %45, %cst_41 [1] : vector<8x8xf32> to vector<8xf32>
    %47 = vector.shape_cast %46 : vector<8xf32> to vector<8x1xf32>
    %48 = vector.broadcast %47 : vector<8x1xf32> to vector<8x8xf32>
    %49 = arith.subf %45, %48 : vector<8x8xf32>
    %50 = math.exp %49 : vector<8x8xf32>
    %cst_42 = arith.constant dense<0.000000e+00> : vector<8xf32>
    %51 = vector.multi_reduction <add>, %50, %cst_42 [1] : vector<8x8xf32> to vector<8xf32>
    %52 = vector.shape_cast %51 : vector<8xf32> to vector<8x1xf32>
    %53 = vector.broadcast %52 : vector<8x1xf32> to vector<8x8xf32>
    %54 = arith.divf %50, %53 : vector<8x8xf32>
    %cst_43 = arith.constant dense<0.000000e+00> : vector<8x8xf32>
    %55 = tpu.matmul %54, %38, %cst_43 {dimension_numbers = #tpu.dot_dimension_numbers<[1], [0], [0], [1], [0, 0, 1, 1], [], []>} : vector<8x8xf32>, vector<8x8xf32>, vector<8x8xf32> -> vector<8x8xf32>
    %c8 = arith.constant 8 : index
    %c0_44 = arith.constant 0 : index
    %56 = vector.load %arg6[%c8, %c0_44] : memref<32x32xf32, #tpu.memory_space<vmem>>, vector<8x32xf32>
    %cst_45 = arith.constant dense<0.000000e+00> : vector<8x32xf32>
    %57 = tpu.matmul %55, %56, %cst_45 {dimension_numbers = #tpu.dot_dimension_numbers<[1], [0], [0], [1], [0, 0, 1, 1], [], []>} : vector<8x8xf32>, vector<8x32xf32>, vector<8x32xf32> -> vector<8x32xf32>
    %58 = arith.addf %30, %57 : vector<8x32xf32>
    %c0_46 = arith.constant 0 : index
    %c2 = arith.constant 2 : index
    %c0_47 = arith.constant 0 : index
    %c0_48 = arith.constant 0 : index
    %59 = vector.load %arg1[%c0_46, %c2, %c0_47, %c0_48] : memref<1x4x8x8xf32, #tpu.memory_space<vmem>>, vector<1x1x8x8xf32>
    %60 = vector.shape_cast %59 : vector<1x1x8x8xf32> to vector<8x8xf32>
    %c0_49 = arith.constant 0 : index
    %c0_50 = arith.constant 0 : index
    %61 = vector.load %arg3[%c0_49, %c0_50] : memref<8x8xf32, #tpu.memory_space<vmem>>, vector<8x8xf32>
    %cst_51 = arith.constant dense<0.000000e+00> : vector<8x8xf32>
    %62 = tpu.matmul %60, %61, %cst_51 {dimension_numbers = #tpu.dot_dimension_numbers<[1], [0], [0], [1], [0, 0, 1, 1], [], []>} : vector<8x8xf32>, vector<8x8xf32>, vector<8x8xf32> -> vector<8x8xf32>
    %c0_52 = arith.constant 0 : index
    %c0_53 = arith.constant 0 : index
    %63 = vector.load %arg4[%c0_52, %c0_53] : memref<8x8xf32, #tpu.memory_space<vmem>>, vector<8x8xf32>
    %cst_54 = arith.constant dense<0.000000e+00> : vector<8x8xf32>
    %64 = tpu.matmul %60, %63, %cst_54 {dimension_numbers = #tpu.dot_dimension_numbers<[1], [0], [0], [1], [0, 0, 1, 1], [], []>} : vector<8x8xf32>, vector<8x8xf32>, vector<8x8xf32> -> vector<8x8xf32>
    %c0_55 = arith.constant 0 : index
    %c0_56 = arith.constant 0 : index
    %65 = vector.load %arg5[%c0_55, %c0_56] : memref<8x8xf32, #tpu.memory_space<vmem>>, vector<8x8xf32>
    %cst_57 = arith.constant dense<0.000000e+00> : vector<8x8xf32>
    %66 = tpu.matmul %60, %65, %cst_57 {dimension_numbers = #tpu.dot_dimension_numbers<[1], [0], [0], [1], [0, 0, 1, 1], [], []>} : vector<8x8xf32>, vector<8x8xf32>, vector<8x8xf32> -> vector<8x8xf32>
    %cst_58 = arith.constant dense<0.000000e+00> : vector<8x8xf32>
    %67 = tpu.matmul %62, %64, %cst_58 {dimension_numbers = #tpu.dot_dimension_numbers<[1], [1], [0], [0], [0, 0, 1, 0], [], []>} : vector<8x8xf32>, vector<8x8xf32>, vector<8x8xf32> -> vector<8x8xf32>
    %cst_59 = arith.constant 0.000000e+00 : f32
    %68 = vector.broadcast %cst_59 : f32 to vector<8x8xf32>
    %69 = arith.cmpf oeq, %1, %68 : vector<8x8xf32>
    %cst_60 = arith.constant -1.000000e+20 : f32
    %70 = vector.broadcast %cst_60 : f32 to vector<8x8xf32>
    %71 = arith.select %69, %70, %67 : vector<8x8xi1>, vector<8x8xf32>
    %cst_61 = arith.constant 0.176776692 : f32
    %72 = vector.broadcast %cst_61 : f32 to vector<8x8xf32>
    %73 = arith.mulf %71, %72 : vector<8x8xf32>
    %cst_62 = arith.constant dense<0xFF800000> : vector<8xf32>
    %74 = vector.multi_reduction <maximumf>, %73, %cst_62 [1] : vector<8x8xf32> to vector<8xf32>
    %75 = vector.shape_cast %74 : vector<8xf32> to vector<8x1xf32>
    %76 = vector.broadcast %75 : vector<8x1xf32> to vector<8x8xf32>
    %77 = arith.subf %73, %76 : vector<8x8xf32>
    %78 = math.exp %77 : vector<8x8xf32>
    %cst_63 = arith.constant dense<0.000000e+00> : vector<8xf32>
    %79 = vector.multi_reduction <add>, %78, %cst_63 [1] : vector<8x8xf32> to vector<8xf32>
    %80 = vector.shape_cast %79 : vector<8xf32> to vector<8x1xf32>
    %81 = vector.broadcast %80 : vector<8x1xf32> to vector<8x8xf32>
    %82 = arith.divf %78, %81 : vector<8x8xf32>
    %cst_64 = arith.constant dense<0.000000e+00> : vector<8x8xf32>
    %83 = tpu.matmul %82, %66, %cst_64 {dimension_numbers = #tpu.dot_dimension_numbers<[1], [0], [0], [1], [0, 0, 1, 1], [], []>} : vector<8x8xf32>, vector<8x8xf32>, vector<8x8xf32> -> vector<8x8xf32>
    %c16 = arith.constant 16 : index
    %c0_65 = arith.constant 0 : index
    %84 = vector.load %arg6[%c16, %c0_65] : memref<32x32xf32, #tpu.memory_space<vmem>>, vector<8x32xf32>
    %cst_66 = arith.constant dense<0.000000e+00> : vector<8x32xf32>
    %85 = tpu.matmul %83, %84, %cst_66 {dimension_numbers = #tpu.dot_dimension_numbers<[1], [0], [0], [1], [0, 0, 1, 1], [], []>} : vector<8x8xf32>, vector<8x32xf32>, vector<8x32xf32> -> vector<8x32xf32>
    %86 = arith.addf %58, %85 : vector<8x32xf32>
    %c0_67 = arith.constant 0 : index
    %c3 = arith.constant 3 : index
    %c0_68 = arith.constant 0 : index
    %c0_69 = arith.constant 0 : index
    %87 = vector.load %arg1[%c0_67, %c3, %c0_68, %c0_69] : memref<1x4x8x8xf32, #tpu.memory_space<vmem>>, vector<1x1x8x8xf32>
    %88 = vector.shape_cast %87 : vector<1x1x8x8xf32> to vector<8x8xf32>
    %c0_70 = arith.constant 0 : index
    %c0_71 = arith.constant 0 : index
    %89 = vector.load %arg3[%c0_70, %c0_71] : memref<8x8xf32, #tpu.memory_space<vmem>>, vector<8x8xf32>
    %cst_72 = arith.constant dense<0.000000e+00> : vector<8x8xf32>
    %90 = tpu.matmul %88, %89, %cst_72 {dimension_numbers = #tpu.dot_dimension_numbers<[1], [0], [0], [1], [0, 0, 1, 1], [], []>} : vector<8x8xf32>, vector<8x8xf32>, vector<8x8xf32> -> vector<8x8xf32>
    %c0_73 = arith.constant 0 : index
    %c0_74 = arith.constant 0 : index
    %91 = vector.load %arg4[%c0_73, %c0_74] : memref<8x8xf32, #tpu.memory_space<vmem>>, vector<8x8xf32>
    %cst_75 = arith.constant dense<0.000000e+00> : vector<8x8xf32>
    %92 = tpu.matmul %88, %91, %cst_75 {dimension_numbers = #tpu.dot_dimension_numbers<[1], [0], [0], [1], [0, 0, 1, 1], [], []>} : vector<8x8xf32>, vector<8x8xf32>, vector<8x8xf32> -> vector<8x8xf32>
    %c0_76 = arith.constant 0 : index
    %c0_77 = arith.constant 0 : index
    %93 = vector.load %arg5[%c0_76, %c0_77] : memref<8x8xf32, #tpu.memory_space<vmem>>, vector<8x8xf32>
    %cst_78 = arith.constant dense<0.000000e+00> : vector<8x8xf32>
    %94 = tpu.matmul %88, %93, %cst_78 {dimension_numbers = #tpu.dot_dimension_numbers<[1], [0], [0], [1], [0, 0, 1, 1], [], []>} : vector<8x8xf32>, vector<8x8xf32>, vector<8x8xf32> -> vector<8x8xf32>
    %cst_79 = arith.constant dense<0.000000e+00> : vector<8x8xf32>
    %95 = tpu.matmul %90, %92, %cst_79 {dimension_numbers = #tpu.dot_dimension_numbers<[1], [1], [0], [0], [0, 0, 1, 0], [], []>} : vector<8x8xf32>, vector<8x8xf32>, vector<8x8xf32> -> vector<8x8xf32>
    %cst_80 = arith.constant 0.000000e+00 : f32
    %96 = vector.broadcast %cst_80 : f32 to vector<8x8xf32>
    %97 = arith.cmpf oeq, %1, %96 : vector<8x8xf32>
    %cst_81 = arith.constant -1.000000e+20 : f32
    %98 = vector.broadcast %cst_81 : f32 to vector<8x8xf32>
    %99 = arith.select %97, %98, %95 : vector<8x8xi1>, vector<8x8xf32>
    %cst_82 = arith.constant 0.176776692 : f32
    %100 = vector.broadcast %cst_82 : f32 to vector<8x8xf32>
    %101 = arith.mulf %99, %100 : vector<8x8xf32>
    %cst_83 = arith.constant dense<0xFF800000> : vector<8xf32>
    %102 = vector.multi_reduction <maximumf>, %101, %cst_83 [1] : vector<8x8xf32> to vector<8xf32>
    %103 = vector.shape_cast %102 : vector<8xf32> to vector<8x1xf32>
    %104 = vector.broadcast %103 : vector<8x1xf32> to vector<8x8xf32>
    %105 = arith.subf %101, %104 : vector<8x8xf32>
    %106 = math.exp %105 : vector<8x8xf32>
    %cst_84 = arith.constant dense<0.000000e+00> : vector<8xf32>
    %107 = vector.multi_reduction <add>, %106, %cst_84 [1] : vector<8x8xf32> to vector<8xf32>
    %108 = vector.shape_cast %107 : vector<8xf32> to vector<8x1xf32>
    %109 = vector.broadcast %108 : vector<8x1xf32> to vector<8x8xf32>
    %110 = arith.divf %106, %109 : vector<8x8xf32>
    %cst_85 = arith.constant dense<0.000000e+00> : vector<8x8xf32>
    %111 = tpu.matmul %110, %94, %cst_85 {dimension_numbers = #tpu.dot_dimension_numbers<[1], [0], [0], [1], [0, 0, 1, 1], [], []>} : vector<8x8xf32>, vector<8x8xf32>, vector<8x8xf32> -> vector<8x8xf32>
    %c24 = arith.constant 24 : index
    %c0_86 = arith.constant 0 : index
    %112 = vector.load %arg6[%c24, %c0_86] : memref<32x32xf32, #tpu.memory_space<vmem>>, vector<8x32xf32>
    %cst_87 = arith.constant dense<0.000000e+00> : vector<8x32xf32>
    %113 = tpu.matmul %111, %112, %cst_87 {dimension_numbers = #tpu.dot_dimension_numbers<[1], [0], [0], [1], [0, 0, 1, 1], [], []>} : vector<8x8xf32>, vector<8x32xf32>, vector<8x32xf32> -> vector<8x32xf32>
    %114 = arith.addf %86, %113 : vector<8x32xf32>
    %c0_88 = arith.constant 0 : index
    %c0_89 = arith.constant 0 : index
    %115 = vector.load %arg7[%c0_88, %c0_89] : memref<1x32xf32, #tpu.memory_space<vmem>>, vector<1x32xf32>
    %116 = vector.broadcast %115 : vector<1x32xf32> to vector<8x32xf32>
    %117 = arith.addf %114, %116 : vector<8x32xf32>
    %c0_90 = arith.constant 0 : index
    %c0_91 = arith.constant 0 : index
    %c0_92 = arith.constant 0 : index
    %118 = vector.load %arg8[%c0_90, %c0_91, %c0_92] : memref<1x8x32xf32, #tpu.memory_space<vmem>>, vector<1x8x32xf32>
    %119 = vector.shape_cast %118 : vector<1x8x32xf32> to vector<8x32xf32>
    %120 = vector.shape_cast %117 : vector<8x32xf32> to vector<1x8x32xf32>
    tpu.vector_store %arg8[%c0_90, %c0_91, %c0_92], %120 {strides = array<i32>} : memref<1x8x32xf32, #tpu.memory_space<vmem>>, vector<1x8x32xf32>,
    return
  }
  func.func @transform_0(%arg0: i32) -> (i32, i32, i32, i32) {
    %c0_i32 = arith.constant 0 : i32
    %c0_i32_0 = arith.constant 0 : i32
    %c0_i32_1 = arith.constant 0 : i32
    %c0_i32_2 = arith.constant 0 : i32
    return %arg0, %c0_i32, %c0_i32_0, %c0_i32_1 : i32, i32, i32, i32
  }
  func.func @transform_1(%arg0: i32) -> (i32, i32, i32) {
    %c0_i32 = arith.constant 0 : i32
    %c0_i32_0 = arith.constant 0 : i32
    %c0_i32_1 = arith.constant 0 : i32
    return %arg0, %c0_i32, %c0_i32_0 : i32, i32, i32
  }
  func.func @transform_2(%arg0: i32) -> (i32, i32) {
    %c0_i32 = arith.constant 0 : i32
    %c0_i32_0 = arith.constant 0 : i32
    %c0_i32_1 = arith.constant 0 : i32
    return %c0_i32, %c0_i32_0 : i32, i32
  }
  func.func @transform_3(%arg0: i32) -> (i32, i32) {
    %c0_i32 = arith.constant 0 : i32
    %c0_i32_0 = arith.constant 0 : i32
    %c0_i32_1 = arith.constant 0 : i32
    return %c0_i32, %c0_i32_0 : i32, i32
  }
  func.func @transform_4(%arg0: i32) -> (i32, i32) {
    %c0_i32 = arith.constant 0 : i32
    %c0_i32_0 = arith.constant 0 : i32
    %c0_i32_1 = arith.constant 0 : i32
    return %c0_i32, %c0_i32_0 : i32, i32
  }
  func.func @transform_5(%arg0: i32) -> (i32, i32) {
    %c0_i32 = arith.constant 0 : i32
    %c0_i32_0 = arith.constant 0 : i32
    %c0_i32_1 = arith.constant 0 : i32
    return %c0_i32, %c0_i32_0 : i32, i32
  }
  func.func @transform_6(%arg0: i32) -> (i32, i32) {
    %c0_i32 = arith.constant 0 : i32
    %c0_i32_0 = arith.constant 0 : i32
    %c0_i32_1 = arith.constant 0 : i32
    return %c0_i32, %c0_i32_0 : i32, i32
  }
  func.func @transform_7(%arg0: i32) -> (i32, i32, i32) {
    %c0_i32 = arith.constant 0 : i32
    %c0_i32_0 = arith.constant 0 : i32
    %c0_i32_1 = arith.constant 0 : i32
    return %arg0, %c0_i32, %c0_i32_0 : i32, i32, i32
  }
}

</mosaic_0001>

<llo_original>
// kernel: tpu_custom_call.1
$region0: #{tpu_custom_call.1}
  #allocation0 [shape = 'u32[]', space=smem, size = 0x4, offset = 0x4, fixed_abs, tag = 'smem constant byte address 0x4 - core index']
  #allocation1 [shape = 'u32[144,128]{1,0:T(1,128)}', space=vmem, size = 0x12000, scoped, tag = 'internal scratch']
  %s0 = inlined_call_operand.hbm [shape: f32[2,4,8,8], index: 0, kind: input, shape index: {}]
  %s1 = inlined_call_operand.hbm [shape: f32[2,8,8], index: 1, kind: input, shape index: {}]
  %s2 = inlined_call_operand.hbm [shape: f32[8,8], index: 2, kind: input, shape index: {}]
  %s3 = inlined_call_operand.vmem [shape: f32[8,8], index: 3, kind: input, shape index: {}]
  %s4 = inlined_call_operand.hbm [shape: f32[8,8], index: 4, kind: input, shape index: {}]
  %s5 = inlined_call_operand.hbm [shape: f32[32,32], index: 5, kind: input, shape index: {}]
  %s6 = inlined_call_operand.vmem [shape: f32[1,32], index: 6, kind: input, shape index: {}]
  %s7 = inlined_call_operand.hbm [shape: f32[2,8,32], index: 7, kind: output, shape index: {}]
  %s8 = sld [smem:[#allocation0]]
  $region81: #{tpu_custom_call.1} parent=0
    _
  %s10 = ssub.s32 1, %s8
  %s11 = scalar_select 0, %s10, %s8
  $region1: #{tpu_custom_call.1} parent=0
    #allocation2 [shape = 'u8[32768]{0}', space=vmem, size = 0x8000, scoped, tag = 'input window, operand 0']
    #allocation3 [shape = 's32[2]{0}', space=sflag, size = 0x8, scoped, tag = 'scoped memory for tpu_custom_call.1']
    #allocation4 [shape = 's32[2]{0}', space=sflag, size = 0x8, scoped, tag = 'scoped memory for tpu_custom_call.1']
    #allocation5 [shape = 'u8[8192]{0}', space=vmem, size = 0x2000, scoped, tag = 'input window, operand 1']
    #allocation6 [shape = 's32[2]{0}', space=sflag, size = 0x8, scoped, tag = 'scoped memory for tpu_custom_call.1']
    #allocation7 [shape = 'u8[4096]{0}', space=vmem, size = 0x1000, scoped, tag = 'input window, operand 2, single buffered']
    #allocation8 [shape = 'u8[4096]{0}', space=vmem, size = 0x1000, scoped, tag = 'input window, operand 4, single buffered']
    #allocation9 [shape = 's32[1]{0}', space=sflag, size = 0x4, scoped, tag = 'scoped memory for tpu_custom_call.1']
    #allocation10 [shape = 'u8[16384]{0}', space=vmem, size = 0x4000, scoped, tag = 'input window, operand 5, single buffered']
    #allocation11 [shape = 'u8[8192]{0}', space=vmem, size = 0x2000, scoped, tag = 'output window, operand 0']
    %12 = vsyncpa [#allocation3], 0
    %s13 = scalar_lea.sflag [#allocation3], 1
    %14 = vsyncpa %s13, 0
    %15 = vsyncpa [#allocation6], 0
    %s16 = scalar_lea.sflag [#allocation6], 1
    %17 = vsyncpa %s16, 0
    %18 = vsyncpa [#allocation9], 0
    %19 = vsyncpa [#allocation4], 0
    %s20 = scalar_lea.sflag [#allocation4], 1
    %21 = vsyncpa %s20, 0
    loop: start=0, step=1, limit=4
    $region2: #{tpu_custom_call.1} parent=1 // loop_pre_header
      _
    $region3: #{tpu_custom_call.1} parent=1 // loop_header
      %s23 = sphi 0, %s27
      %p24 = scmp.ge.s32.totalorder %s23, 4
      %s33 = sphi 0, %s35
      %s36 = sphi 0, %s33
      %s37 = sphi 0, %s36
      %s53 = sphi 0, %s37
      %s59 = sphi 0, %s61
      %s62 = sphi 0, %s59
      %s63 = sphi 0, %s62
      %s79 = sphi 0, %s63
      %s83 = sphi 0, %s83
      %s85 = sphi 0, %s83
      %s86 = sphi 0, %s85
      %s100 = sphi 0, %s86
      %s104 = sphi 0, %s104
      %s106 = sphi 0, %s104
      %s107 = sphi 0, %s106
      %s121 = sphi 0, %s107
      %s125 = sphi 0, %s125
      %s127 = sphi 0, %s125
      %s128 = sphi 0, %s127
      %s142 = sphi 0, %s128
      %s146 = sphi 0, %s146
      %s148 = sphi 0, %s146
      %s149 = sphi 0, %s148
      %s163 = sphi 0, %s149
      %s167 = sphi 0, %s167
      %s169 = sphi 0, %s167
      %s170 = sphi 0, %s169
      %s184 = sphi 0, %s170
      %s190 = sphi 0, %s192
      %s193 = sphi 0, %s190
      %s194 = sphi 0, %s193
      %s210 = sphi 0, %s194
    $region4: #{tpu_custom_call.1} parent=1 // loop_header_branch
      %26 = sbr.rel (%p24) target = $region8
    $region5: #{tpu_custom_call.1} parent=1 // loop_body
      %s28 = ssub.s32 %s23, 1
      %s29 = ssub.s32 %s23, 2
      %s30 = sadd.s32 %s23, 1
      %s31 = ssub.s32 %s23, %s30
      %p32 = scmp.eq.s32.totalorder %s31, 0
      %s34 = sadd.s32 %s33, 1
      %s35 = scalar_select %p32, %s33, %s34
      %p38 = pneg %p32
      %p39 = scmp.eq.s32.totalorder %s23, 1
      %p40 = por %p38, %p39
      %p41 = scmp.ne.s32.totalorder %s33, %s36
      %p42 = scmp.eq.s32.totalorder %s23, 0
      %p43 = por %p41, %p42
      %p44 = scmp.ne.s32.totalorder %s33, %s36
      %p45 = scmp.eq.s32.totalorder %s28, 1
      %p46 = por %p44, %p45
      %p47 = scmp.ne.s32.totalorder %s36, %s37
      %p48 = scmp.eq.s32.totalorder %s28, 0
      %p49 = por %p47, %p48
      %p50 = scmp.ne.s32.totalorder %s36, %s37
      %p51 = scmp.eq.s32.totalorder %s29, 1
      %p52 = por %p50, %p51
      %p54 = scmp.ne.s32.totalorder %s37, %s53
      %p55 = scmp.eq.s32.totalorder %s29, 0
      %p56 = por %p54, %p55
      %s57 = ssub.s32 %s23, %s30
      %p58 = scmp.eq.s32.totalorder %s57, 0
      %s60 = sadd.s32 %s59, 1
      %s61 = scalar_select %p58, %s59, %s60
      %p64 = pneg %p58
      %p65 = scmp.eq.s32.totalorder %s23, 1
      %p66 = por %p64, %p65
      %p67 = scmp.ne.s32.totalorder %s59, %s62
      %p68 = scmp.eq.s32.totalorder %s23, 0
      %p69 = por %p67, %p68
      %p70 = scmp.ne.s32.totalorder %s59, %s62
      %p71 = scmp.eq.s32.totalorder %s28, 1
      %p72 = por %p70, %p71
      %p73 = scmp.ne.s32.totalorder %s62, %s63
      %p74 = scmp.eq.s32.totalorder %s28, 0
      %p75 = por %p73, %p74
      %p76 = scmp.ne.s32.totalorder %s62, %s63
      %p77 = scmp.eq.s32.totalorder %s29, 1
      %p78 = por %p76, %p77
      %p80 = scmp.ne.s32.totalorder %s63, %s79
      %p81 = scmp.eq.s32.totalorder %s29, 0
      %p82 = por %p80, %p81
      %s84 = sadd.s32 %s83, 1
      %p87 = scmp.eq.s32.totalorder %s23, 1
      %p88 = scmp.ne.s32.totalorder %s83, %s85
      %p89 = scmp.eq.s32.totalorder %s23, 0
      %p90 = por %p88, %p89
      %p91 = scmp.ne.s32.totalorder %s83, %s85
      %p92 = scmp.eq.s32.totalorder %s28, 1
      %p93 = por %p91, %p92
      %p94 = scmp.ne.s32.totalorder %s85, %s86
      %p95 = scmp.eq.s32.totalorder %s28, 0
      %p96 = por %p94, %p95
      %p97 = scmp.ne.s32.totalorder %s85, %s86
      %p98 = scmp.eq.s32.totalorder %s29, 1
      %p99 = por %p97, %p98
      %p101 = scmp.ne.s32.totalorder %s86, %s100
      %p102 = scmp.eq.s32.totalorder %s29, 0
      %p103 = por %p101, %p102
      %s105 = sadd.s32 %s104, 1
      %p108 = scmp.eq.s32.totalorder %s23, 1
      %p109 = scmp.ne.s32.totalorder %s104, %s106
      %p110 = scmp.eq.s32.totalorder %s23, 0
      %p111 = por %p109, %p110
      %p112 = scmp.ne.s32.totalorder %s104, %s106
      %p113 = scmp.eq.s32.totalorder %s28, 1
      %p114 = por %p112, %p113
      %p115 = scmp.ne.s32.totalorder %s106, %s107
      %p116 = scmp.eq.s32.totalorder %s28, 0
      %p117 = por %p115, %p116
      %p118 = scmp.ne.s32.totalorder %s106, %s107
      %p119 = scmp.eq.s32.totalorder %s29, 1
      %p120 = por %p118, %p119
      %p122 = scmp.ne.s32.totalorder %s107, %s121
      %p123 = scmp.eq.s32.totalorder %s29, 0
      %p124 = por %p122, %p123
      %s126 = sadd.s32 %s125, 1
      %p129 = scmp.eq.s32.totalorder %s23, 1
      %p130 = scmp.ne.s32.totalorder %s125, %s127
      %p131 = scmp.eq.s32.totalorder %s23, 0
      %p132 = por %p130, %p131
      %p133 = scmp.ne.s32.totalorder %s125, %s127
      %p134 = scmp.eq.s32.totalorder %s28, 1
      %p135 = por %p133, %p134
      %p136 = scmp.ne.s32.totalorder %s127, %s128
      %p137 = scmp.eq.s32.totalorder %s28, 0
      %p138 = por %p136, %p137
      %p139 = scmp.ne.s32.totalorder %s127, %s128
      %p140 = scmp.eq.s32.totalorder %s29, 1
      %p141 = por %p139, %p140
      %p143 = scmp.ne.s32.totalorder %s128, %s142
      %p144 = scmp.eq.s32.totalorder %s29, 0
      %p145 = por %p143, %p144
      %s147 = sadd.s32 %s146, 1
      %p150 = scmp.eq.s32.totalorder %s23, 1
      %p151 = scmp.ne.s32.totalorder %s146, %s148
      %p152 = scmp.eq.s32.totalorder %s23, 0
      %p153 = por %p151, %p152
      %p154 = scmp.ne.s32.totalorder %s146, %s148
      %p155 = scmp.eq.s32.totalorder %s28, 1
      %p156 = por %p154, %p155
      %p157 = scmp.ne.s32.totalorder %s148, %s149
      %p158 = scmp.eq.s32.totalorder %s28, 0
      %p159 = por %p157, %p158
      %p160 = scmp.ne.s32.totalorder %s148, %s149
      %p161 = scmp.eq.s32.totalorder %s29, 1
      %p162 = por %p160, %p161
      %p164 = scmp.ne.s32.totalorder %s149, %s163
      %p165 = scmp.eq.s32.totalorder %s29, 0
      %p166 = por %p164, %p165
      %s168 = sadd.s32 %s167, 1
      %p171 = scmp.eq.s32.totalorder %s23, 1
      %p172 = scmp.ne.s32.totalorder %s167, %s169
      %p173 = scmp.eq.s32.totalorder %s23, 0
      %p174 = por %p172, %p173
      %p175 = scmp.ne.s32.totalorder %s167, %s169
      %p176 = scmp.eq.s32.totalorder %s28, 1
      %p177 = por %p175, %p176
      %p178 = scmp.ne.s32.totalorder %s169, %s170
      %p179 = scmp.eq.s32.totalorder %s28, 0
      %p180 = por %p178, %p179
      %p181 = scmp.ne.s32.totalorder %s169, %s170
      %p182 = scmp.eq.s32.totalorder %s29, 1
      %p183 = por %p181, %p182
      %p185 = scmp.ne.s32.totalorder %s170, %s184
      %p186 = scmp.eq.s32.totalorder %s29, 0
      %p187 = por %p185, %p186
      %s188 = ssub.s32 %s23, %s30
      %p189 = scmp.eq.s32.totalorder %s188, 0
      %s191 = sadd.s32 %s190, 1
      %s192 = scalar_select %p189, %s190, %s191
      %p195 = pneg %p189
      %p196 = scmp.eq.s32.totalorder %s23, 1
      %p197 = por %p195, %p196
      %p198 = scmp.ne.s32.totalorder %s190, %s193
      %p199 = scmp.eq.s32.totalorder %s23, 0
      %p200 = por %p198, %p199
      %p201 = scmp.ne.s32.totalorder %s190, %s193
      %p202 = scmp.eq.s32.totalorder %s28, 1
      %p203 = por %p201, %p202
      %p204 = scmp.ne.s32.totalorder %s193, %s194
      %p205 = scmp.eq.s32.totalorder %s28, 0
      %p206 = por %p204, %p205
      %p207 = scmp.ne.s32.totalorder %s193, %s194
      %p208 = scmp.eq.s32.totalorder %s29, 1
      %p209 = por %p207, %p208
      %p211 = scmp.ne.s32.totalorder %s194, %s210
      %p212 = scmp.eq.s32.totalorder %s29, 0
      %p213 = por %p211, %p212
      %p214 = scmp.le.s32.totalorder 1, %s23
      %p215 = scmp.lt.s32.totalorder %s23, 3
      %p216 = pnand %p214, %p215
      %p217 = pneg %p216
      // Predicated region
      $region9: #{tpu_custom_call.1} parent=5 // pred_check
        _
      $region10: #{tpu_custom_call.1} parent=5 // pred_check_branch
        %219 = sbr.rel (%p216) target = $region12
      $region11: #{tpu_custom_call.1} parent=5 // pred_region
        %s220 = ssub.s32 %s23, 1
        // Predicated region
        $region13: #{tpu_custom_call.1} parent=11 // pred_check
          %p221 = pneg %p96
        $region14: #{tpu_custom_call.1} parent=11 // pred_check_branch
          %223 = sbr.rel (%p221) target = $region16
        $region15: #{tpu_custom_call.1} parent=11 // pred_region
          %s225 = ssub.s32 128, 128
          %226 = vsyncadd [#allocation6], %s225
          %s228 = sshll.u32 [#allocation7], 4
          %s229 = int_to_ptr.vmem [resolvable:$true] %s228
          %231 = dma.hbm_to_vmem [thread:$0]  %s2, 128, %s229, [#allocation6]
        $region16: #{tpu_custom_call.1} parent=11 // pred_fallthru
          _
        // Predicated region
        $region17: #{tpu_custom_call.1} parent=11 // pred_check
          %p232 = pneg %p117
        $region18: #{tpu_custom_call.1} parent=11 // pred_check_branch
          %234 = sbr.rel (%p232) target = $region20
        $region19: #{tpu_custom_call.1} parent=11 // pred_region
          _
        $region20: #{tpu_custom_call.1} parent=11 // pred_fallthru
          _
        // Predicated region
        $region21: #{tpu_custom_call.1} parent=11 // pred_check
          %p235 = pneg %p138
        $region22: #{tpu_custom_call.1} parent=11 // pred_check_branch
          %237 = sbr.rel (%p235) target = $region24
        $region23: #{tpu_custom_call.1} parent=11 // pred_region
          %s239 = ssub.s32 128, 128
          %240 = vsyncadd [#allocation9], %s239
          %s242 = sshll.u32 [#allocation8], 4
          %s243 = int_to_ptr.vmem [resolvable:$true] %s242
          %245 = dma.hbm_to_vmem [thread:$0]  %s4, 128, %s243, [#allocation9]
        $region24: #{tpu_custom_call.1} parent=11 // pred_fallthru
          _
        // Predicated region
        $region25: #{tpu_custom_call.1} parent=11 // pred_check
          %p246 = pneg %p159
        $region26: #{tpu_custom_call.1} parent=11 // pred_check_branch
          %248 = sbr.rel (%p246) target = $region28
        $region27: #{tpu_custom_call.1} parent=11 // pred_region
          %s250 = ssub.s32 512, 512
          %251 = vsyncadd [#allocation9], %s250
          %s252 = sshll.u32 [#allocation10], 4
          %s253 = int_to_ptr.vmem [resolvable:$true] %s252
          %258 = dma.hbm_to_vmem [thread:$0]  %s5, 512, %s253, [#allocation9], 128, 128, 8
        $region28: #{tpu_custom_call.1} parent=11 // pred_fallthru
          _
        // Predicated region
        $region29: #{tpu_custom_call.1} parent=11 // pred_check
          %p259 = pneg %p180
        $region30: #{tpu_custom_call.1} parent=11 // pred_check_branch
          %261 = sbr.rel (%p259) target = $region32
        $region31: #{tpu_custom_call.1} parent=11 // pred_region
          _
        $region32: #{tpu_custom_call.1} parent=11 // pred_fallthru
          _
      $region12: #{tpu_custom_call.1} parent=5 // pred_fallthru
        _
      %p262 = scmp.lt.s32.totalorder %s23, 2
      // Predicated region
      $region33: #{tpu_custom_call.1} parent=5 // pred_check
        %p263 = pneg %p262
      $region34: #{tpu_custom_call.1} parent=5 // pred_check_branch
        %265 = sbr.rel (%p263) target = $region36
      $region35: #{tpu_custom_call.1} parent=5 // pred_region
        // Predicated region
        $region37: #{tpu_custom_call.1} parent=35 // pred_check
          %p266 = pneg %p43
        $region38: #{tpu_custom_call.1} parent=35 // pred_check_branch
          %268 = sbr.rel (%p266) target = $region40
        $region39: #{tpu_custom_call.1} parent=35 // pred_region
          %s269 = sand.u32 %s33, 1
          %s270 = scalar_lea.sflag [#allocation3], %s269
          %s271 = sand.u32 %s33, 1
          %s272 = smul.addr %s271, 32
          %s273 = scalar_lea.vmem [#allocation2], %s272
          %s275 = ssub.s32 512, 512
          %276 = vsyncadd %s270, %s275
          %s277 = smul.addr %s23, 4
          %s278 = smul.addr %s277, 128
          %s279 = scalar_lea.hbm %s0, %s278
          %s280 = sshll.u32 %s273, 4
          %s281 = int_to_ptr.vmem [resolvable:$true] %s280
          %286 = dma.hbm_to_vmem [thread:$0]  %s279, 512, %s281, %s270, 128, 128, 8
        $region40: #{tpu_custom_call.1} parent=35 // pred_fallthru
          _
        // Predicated region
        $region41: #{tpu_custom_call.1} parent=35 // pred_check
          %p287 = pneg %p69
        $region42: #{tpu_custom_call.1} parent=35 // pred_check_branch
          %289 = sbr.rel (%p287) target = $region44
        $region43: #{tpu_custom_call.1} parent=35 // pred_region
          %s290 = sand.u32 %s23, 1
          %s291 = scalar_lea.sflag [#allocation6], %s290
          %s292 = sand.u32 %s59, 1
          %s293 = smul.addr %s292, 8
          %s294 = scalar_lea.vmem [#allocation5], %s293
          %s296 = ssub.s32 128, 128
          %297 = vsyncadd %s291, %s296
          %s298 = smul.addr %s23, 128
          %s299 = scalar_lea.hbm %s1, %s298
          %s301 = sshll.u32 %s294, 4
          %s302 = int_to_ptr.vmem [resolvable:$true] %s301
          %304 = dma.hbm_to_vmem [thread:$0]  %s299, 128, %s302, %s291
        $region44: #{tpu_custom_call.1} parent=35 // pred_fallthru
          _
      $region36: #{tpu_custom_call.1} parent=5 // pred_fallthru
        _
      %p305 = scmp.le.s32.totalorder 1, %s23
      %p306 = scmp.lt.s32.totalorder %s23, 3
      %p307 = pnand %p305, %p306
      %p308 = pneg %p307
      // Predicated region
      $region45: #{tpu_custom_call.1} parent=5 // pred_check
        _
      $region46: #{tpu_custom_call.1} parent=5 // pred_check_branch
        %310 = sbr.rel (%p307) target = $region48
      $region47: #{tpu_custom_call.1} parent=5 // pred_region
        %s311 = ssub.s32 %s23, 1
        %s312 = sand.u32 %s36, 1
        %s313 = scalar_lea.sflag [#allocation3], %s312
        %s314 = sand.u32 %s36, 1
        %s315 = smul.addr %s314, 32
        %s316 = scalar_lea.vmem [#allocation2], %s315
        // Predicated region
        $region49: #{tpu_custom_call.1} parent=47 // pred_check
          %p317 = pneg %p49
        $region50: #{tpu_custom_call.1} parent=47 // pred_check_branch
          %319 = sbr.rel (%p317) target = $region52
        $region51: #{tpu_custom_call.1} parent=47 // pred_region
          %320 = dma.done %s313, 512
        $region52: #{tpu_custom_call.1} parent=47 // pred_fallthru
          _
        %s321 = sand.u32 %s28, 1
        %s322 = scalar_lea.sflag [#allocation6], %s321
        %s323 = sand.u32 %s62, 1
        %s324 = smul.addr %s323, 8
        %s325 = scalar_lea.vmem [#allocation5], %s324
        // Predicated region
        $region53: #{tpu_custom_call.1} parent=47 // pred_check
          %p326 = pneg %p75
        $region54: #{tpu_custom_call.1} parent=47 // pred_check_branch
          %328 = sbr.rel (%p326) target = $region56
        $region55: #{tpu_custom_call.1} parent=47 // pred_region
          %329 = dma.done %s322, 128
        $region56: #{tpu_custom_call.1} parent=47 // pred_fallthru
          _
        // Predicated region
        $region57: #{tpu_custom_call.1} parent=47 // pred_check
          %p330 = pneg %p96
        $region58: #{tpu_custom_call.1} parent=47 // pred_check_branch
          %332 = sbr.rel (%p330) target = $region60
        $region59: #{tpu_custom_call.1} parent=47 // pred_region
          %333 = dma.done [#allocation6], 128
        $region60: #{tpu_custom_call.1} parent=47 // pred_fallthru
          _
        // Predicated region
        $region61: #{tpu_custom_call.1} parent=47 // pred_check
          %p334 = pneg %p138
        $region62: #{tpu_custom_call.1} parent=47 // pred_check_branch
          %336 = sbr.rel (%p334) target = $region64
        $region63: #{tpu_custom_call.1} parent=47 // pred_region
          %337 = dma.done [#allocation9], 128
        $region64: #{tpu_custom_call.1} parent=47 // pred_fallthru
          _
        // Predicated region
        $region65: #{tpu_custom_call.1} parent=47 // pred_check
          %p338 = pneg %p159
        $region66: #{tpu_custom_call.1} parent=47 // pred_check_branch
          %340 = sbr.rel (%p338) target = $region68
        $region67: #{tpu_custom_call.1} parent=47 // pred_region
          %341 = dma.done [#allocation9], 512
        $region68: #{tpu_custom_call.1} parent=47 // pred_fallthru
          _
        %s342 = sand.u32 %s36, 1
        %s343 = scalar_lea.sflag [#allocation3], %s342
        %s344 = sand.u32 %s36, 1
        %s345 = smul.addr %s344, 32
        %s346 = scalar_lea.vmem [#allocation2], %s345
        %p347 = pneg %p49
        %p348 = pneg %p46
        %s349 = sand.u32 %s28, 1
        %s350 = scalar_lea.sflag [#allocation6], %s349
        %s351 = sand.u32 %s62, 1
        %s352 = smul.addr %s351, 8
        %s353 = scalar_lea.vmem [#allocation5], %s352
        %p354 = pneg %p75
        %p355 = pneg %p72
        %p356 = pneg %p96
        %p357 = pneg %p93
        %p358 = pneg %p117
        %p359 = pneg %p114
        %p360 = pneg %p138
        %p361 = pneg %p135
        %p362 = pneg %p159
        %p363 = pneg %p156
        %p364 = pneg %p180
        %p365 = pneg %p177
        %p366 = pneg %p206
        %p367 = pneg %p203
        %s368 = sand.u32 %s193, 1
        %s369 = scalar_lea.sflag [#allocation4], %s368
        %s370 = sand.u32 %s193, 1
        %s371 = smul.addr %s370, 8
        %s372 = scalar_lea.vmem [#allocation11], %s371
        %v373 = vld [vmem:[%s325] sm:$0xff]
        %v374 = vld [vmem:[%s316] sm:$0xff]
        %v375 = vld [vmem:[#allocation7] sm:$0xff]
        %vm376 = vcmask 64512
        %v378 = vsel %vm376, %v374, 0
        %380 = vmatprep.subr.mxu0 0.0
        %381 = vmatpush1.msra.mxu0 %v375
        %382 = vmatprep.subr.mxu0 0.0
        %383 = vmatpush1.msra.mxu0 0.0
        %384 = vmatprep.subr.mxu0 0.0
        %385 = vmatpush1.msra.mxu0 0.0
        %386 = vmatprep.subr.mxu0 0.0
        %387 = vmatpush1.msra.mxu0 0.0
        %388 = vmatprep.subr.mxu0 0.0
        %389 = vmatpush1.msra.mxu0 0.0
        %390 = vmatprep.subr.mxu0 0.0
        %391 = vmatpush1.msra.mxu0 0.0
        %392 = vmatprep.subr.mxu0 0.0
        %393 = vmatpush1.msra.mxu0 0.0
        %394 = vmatprep.subr.mxu0 0.0
        %395 = vmatpush1.msra.mxu0 0.0
        %396 = vmatprep.subr.mxu0 0.0
        %397 = vmatpush1.msra.mxu0 0.0
        %398 = vmatprep.subr.mxu0 0.0
        %399 = vmatpush1.msra.mxu0 0.0
        %400 = vmatprep.subr.mxu0 0.0
        %401 = vmatpush1.msra.mxu0 0.0
        %402 = vmatprep.subr.mxu0 0.0
        %403 = vmatpush1.msra.mxu0 0.0
        %404 = vmatprep.subr.mxu0 0.0
        %405 = vmatpush1.msra.mxu0 0.0
        %406 = vmatprep.subr.mxu0 0.0
        %407 = vmatpush1.msra.mxu0 0.0
        %408 = vmatprep.subr.mxu0 0.0
        %409 = vmatpush1.msra.mxu0 0.0
        %410 = vmatprep.subr.mxu0 0.0
        %411 = vmatpush1.msra.mxu0 0.0
        %412 = vmatprep.subr.mxu0 0.0
        %413 = vmatpush1.msra.mxu0 0.0
        %414 = vmatprep.subr.mxu0 0.0
        %415 = vmatpush1.msra.mxu0 0.0
        %416 = vmatprep.subr.mxu0 0.0
        %417 = vmatpush1.msra.mxu0 0.0
        %418 = vmatprep.subr.mxu0 0.0
        %419 = vmatpush1.msra.mxu0 0.0
        %420 = vmatprep.subr.mxu0 0.0
        %421 = vmatpush1.msra.mxu0 0.0
        %422 = vmatprep.subr.mxu0 0.0
        %423 = vmatpush1.msra.mxu0 0.0
        %424 = vmatprep.subr.mxu0 0.0
        %425 = vmatpush1.msra.mxu0 0.0
        %426 = vmatprep.subr.mxu0 0.0
        %427 = vmatpush1.msra.mxu0 0.0
        %428 = vmatprep.subr.mxu0 0.0
        %429 = vmatpush1.msra.mxu0 0.0
        %430 = vmatprep.subr.mxu0 0.0
        %431 = vmatpush1.msra.mxu0 0.0
        %432 = vmatprep.subr.mxu0 0.0
        %433 = vmatpush1.msra.mxu0 0.0
        %434 = vmatprep.subr.mxu0 0.0
        %435 = vmatpush1.msra.mxu0 0.0
        %436 = vmatprep.subr.mxu0 0.0
        %437 = vmatpush1.msra.mxu0 0.0
        %438 = vmatprep.subr.mxu0 0.0
        %439 = vmatpush1.msra.mxu0 0.0
        %440 = vmatprep.subr.mxu0 0.0
        %441 = vmatpush1.msra.mxu0 0.0
        %442 = vmatprep.subr.mxu0 0.0
        %443 = vmatpush1.msra.mxu0 0.0
        %444 = vmatprep.mubr.f32.mxu0 0.0
        %445 = vmatmul.mubr.f32.gmra.mrb[0].mxu0 %v378
        %v446 = vpop.f32.mrb[0].mxu0
        %v447 = vadd.f32 0.0, %v446
        %v448 = vpop.f32.mrb[0].mxu0
        %449 = vdwg.mxu0
        %v450 = vld [vmem:[%s3] sm:$0xff]
        %451 = vmatprep.subr.mxu0 0.0
        %452 = vmatpush1.msra.mxu0 %v450
        %453 = vmatprep.subr.mxu0 0.0
        %454 = vmatpush1.msra.mxu0 0.0
        %455 = vmatprep.subr.mxu0 0.0
        %456 = vmatpush1.msra.mxu0 0.0
        %457 = vmatprep.subr.mxu0 0.0
        %458 = vmatpush1.msra.mxu0 0.0
        %459 = vmatprep.subr.mxu0 0.0
        %460 = vmatpush1.msra.mxu0 0.0
        %461 = vmatprep.subr.mxu0 0.0
        %462 = vmatpush1.msra.mxu0 0.0
        %463 = vmatprep.subr.mxu0 0.0
        %464 = vmatpush1.msra.mxu0 0.0
        %465 = vmatprep.subr.mxu0 0.0
        %466 = vmatpush1.msra.mxu0 0.0
        %467 = vmatprep.subr.mxu0 0.0
        %468 = vmatpush1.msra.mxu0 0.0
        %469 = vmatprep.subr.mxu0 0.0
        %470 = vmatpush1.msra.mxu0 0.0
        %471 = vmatprep.subr.mxu0 0.0
        %472 = vmatpush1.msra.mxu0 0.0
        %473 = vmatprep.subr.mxu0 0.0
        %474 = vmatpush1.msra.mxu0 0.0
        %475 = vmatprep.subr.mxu0 0.0
        %476 = vmatpush1.msra.mxu0 0.0
        %477 = vmatprep.subr.mxu0 0.0
        %478 = vmatpush1.msra.mxu0 0.0
        %479 = vmatprep.subr.mxu0 0.0
        %480 = vmatpush1.msra.mxu0 0.0
        %481 = vmatprep.subr.mxu0 0.0
        %482 = vmatpush1.msra.mxu0 0.0
        %483 = vmatprep.subr.mxu0 0.0
        %484 = vmatpush1.msra.mxu0 0.0
        %485 = vmatprep.subr.mxu0 0.0
        %486 = vmatpush1.msra.mxu0 0.0
        %487 = vmatprep.subr.mxu0 0.0
        %488 = vmatpush1.msra.mxu0 0.0
        %489 = vmatprep.subr.mxu0 0.0
        %490 = vmatpush1.msra.mxu0 0.0
        %491 = vmatprep.subr.mxu0 0.0
        %492 = vmatpush1.msra.mxu0 0.0
        %493 = vmatprep.subr.mxu0 0.0
        %494 = vmatpush1.msra.mxu0 0.0
        %495 = vmatprep.subr.mxu0 0.0
        %496 = vmatpush1.msra.mxu0 0.0
        %497 = vmatprep.subr.mxu0 0.0
        %498 = vmatpush1.msra.mxu0 0.0
        %499 = vmatprep.subr.mxu0 0.0
        %500 = vmatpush1.msra.mxu0 0.0
        %501 = vmatprep.subr.mxu0 0.0
        %502 = vmatpush1.msra.mxu0 0.0
        %503 = vmatprep.subr.mxu0 0.0
        %504 = vmatpush1.msra.mxu0 0.0
        %505 = vmatprep.subr.mxu0 0.0
        %506 = vmatpush1.msra.mxu0 0.0
        %507 = vmatprep.subr.mxu0 0.0
        %508 = vmatpush1.msra.mxu0 0.0
        %509 = vmatprep.subr.mxu0 0.0
        %510 = vmatpush1.msra.mxu0 0.0
        %511 = vmatprep.subr.mxu0 0.0
        %512 = vmatpush1.msra.mxu0 0.0
        %513 = vmatprep.subr.mxu0 0.0
        %514 = vmatpush1.msra.mxu0 0.0
        %515 = vmatprep.mubr.f32.mxu0 0.0
        %516 = vmatmul.mubr.f32.gmra.mrb[0].mxu0 %v378
        %v517 = vpop.f32.mrb[0].mxu0
        %v518 = vadd.f32 0.0, %v517
        %v519 = vpop.f32.mrb[0].mxu0
        %520 = vdwg.mxu0
        %v521 = vld [vmem:[#allocation8] sm:$0xff]
        %522 = vmatprep.subr.mxu0 0.0
        %523 = vmatpush1.msra.mxu0 %v521
        %524 = vmatprep.subr.mxu0 0.0
        %525 = vmatpush1.msra.mxu0 0.0
        %526 = vmatprep.subr.mxu0 0.0
        %527 = vmatpush1.msra.mxu0 0.0
        %528 = vmatprep.subr.mxu0 0.0
        %529 = vmatpush1.msra.mxu0 0.0
        %530 = vmatprep.subr.mxu0 0.0
        %531 = vmatpush1.msra.mxu0 0.0
        %532 = vmatprep.subr.mxu0 0.0
        %533 = vmatpush1.msra.mxu0 0.0
        %534 = vmatprep.subr.mxu0 0.0
        %535 = vmatpush1.msra.mxu0 0.0
        %536 = vmatprep.subr.mxu0 0.0
        %537 = vmatpush1.msra.mxu0 0.0
        %538 = vmatprep.subr.mxu0 0.0
        %539 = vmatpush1.msra.mxu0 0.0
        %540 = vmatprep.subr.mxu0 0.0
        %541 = vmatpush1.msra.mxu0 0.0
        %542 = vmatprep.subr.mxu0 0.0
        %543 = vmatpush1.msra.mxu0 0.0
        %544 = vmatprep.subr.mxu0 0.0
        %545 = vmatpush1.msra.mxu0 0.0
        %546 = vmatprep.subr.mxu0 0.0
        %547 = vmatpush1.msra.mxu0 0.0
        %548 = vmatprep.subr.mxu0 0.0
        %549 = vmatpush1.msra.mxu0 0.0
        %550 = vmatprep.subr.mxu0 0.0
        %551 = vmatpush1.msra.mxu0 0.0
        %552 = vmatprep.subr.mxu0 0.0
        %553 = vmatpush1.msra.mxu0 0.0
        %554 = vmatprep.subr.mxu0 0.0
        %555 = vmatpush1.msra.mxu0 0.0
        %556 = vmatprep.subr.mxu0 0.0
        %557 = vmatpush1.msra.mxu0 0.0
        %558 = vmatprep.subr.mxu0 0.0
        %559 = vmatpush1.msra.mxu0 0.0
        %560 = vmatprep.subr.mxu0 0.0
        %561 = vmatpush1.msra.mxu0 0.0
        %562 = vmatprep.subr.mxu0 0.0
        %563 = vmatpush1.msra.mxu0 0.0
        %564 = vmatprep.subr.mxu0 0.0
        %565 = vmatpush1.msra.mxu0 0.0
        %566 = vmatprep.subr.mxu0 0.0
        %567 = vmatpush1.msra.mxu0 0.0
        %568 = vmatprep.subr.mxu0 0.0
        %569 = vmatpush1.msra.mxu0 0.0
        %570 = vmatprep.subr.mxu0 0.0
        %571 = vmatpush1.msra.mxu0 0.0
        %572 = vmatprep.subr.mxu0 0.0
        %573 = vmatpush1.msra.mxu0 0.0
        %574 = vmatprep.subr.mxu0 0.0
        %575 = vmatpush1.msra.mxu0 0.0
        %576 = vmatprep.subr.mxu0 0.0
        %577 = vmatpush1.msra.mxu0 0.0
        %578 = vmatprep.subr.mxu0 0.0
        %579 = vmatpush1.msra.mxu0 0.0
        %580 = vmatprep.subr.mxu0 0.0
        %581 = vmatpush1.msra.mxu0 0.0
        %582 = vmatprep.subr.mxu0 0.0
        %583 = vmatpush1.msra.mxu0 0.0
        %584 = vmatprep.subr.mxu0 0.0
        %585 = vmatpush1.msra.mxu0 0.0
        %586 = vmatprep.mubr.f32.mxu0 0.0
        %587 = vmatmul.mubr.f32.gmra.mrb[0].mxu0 %v378
        %v588 = vpop.f32.mrb[0].mxu0
        %v589 = vadd.f32 0.0, %v588
        %v590 = vpop.f32.mrb[0].mxu0
        %591 = vdwg.mxu0
        %v593 = vsel %vm376, %v447, 0
        %v596 = vsel %vm376, %v518, 0
        %598 = vmatprep.subr.mxu0 0.0
        %599 = vmatpush1.xpose.msra.mxu0 %v596
        %600 = vmatprep.subr.mxu0 0.0
        %601 = vmatpush1.xpose.msra.mxu0 0.0
        %602 = vmatprep.subr.mxu0 0.0
        %603 = vmatpush1.xpose.msra.mxu0 0.0
        %604 = vmatprep.subr.mxu0 0.0
        %605 = vmatpush1.xpose.msra.mxu0 0.0
        %606 = vmatprep.subr.mxu0 0.0
        %607 = vmatpush1.xpose.msra.mxu0 0.0
        %608 = vmatprep.subr.mxu0 0.0
        %609 = vmatpush1.xpose.msra.mxu0 0.0
        %610 = vmatprep.subr.mxu0 0.0
        %611 = vmatpush1.xpose.msra.mxu0 0.0
        %612 = vmatprep.subr.mxu0 0.0
        %613 = vmatpush1.xpose.msra.mxu0 0.0
        %614 = vmatprep.subr.mxu0 0.0
        %615 = vmatpush1.xpose.msra.mxu0 0.0
        %616 = vmatprep.subr.mxu0 0.0
        %617 = vmatpush1.xpose.msra.mxu0 0.0
        %618 = vmatprep.subr.mxu0 0.0
        %619 = vmatpush1.xpose.msra.mxu0 0.0
        %620 = vmatprep.subr.mxu0 0.0
        %621 = vmatpush1.xpose.msra.mxu0 0.0
        %622 = vmatprep.subr.mxu0 0.0
        %623 = vmatpush1.xpose.msra.mxu0 0.0
        %624 = vmatprep.subr.mxu0 0.0
        %625 = vmatpush1.xpose.msra.mxu0 0.0
        %626 = vmatprep.subr.mxu0 0.0
        %627 = vmatpush1.xpose.msra.mxu0 0.0
        %628 = vmatprep.subr.mxu0 0.0
        %629 = vmatpush1.xpose.msra.mxu0 0.0
        %630 = vmatprep.subr.mxu0 0.0
        %631 = vmatpush1.xpose.msra.mxu0 0.0
        %632 = vmatprep.subr.mxu0 0.0
        %633 = vmatpush1.xpose.msra.mxu0 0.0
        %634 = vmatprep.subr.mxu0 0.0
        %635 = vmatpush1.xpose.msra.mxu0 0.0
        %636 = vmatprep.subr.mxu0 0.0
        %637 = vmatpush1.xpose.msra.mxu0 0.0
        %638 = vmatprep.subr.mxu0 0.0
        %639 = vmatpush1.xpose.msra.mxu0 0.0
        %640 = vmatprep.subr.mxu0 0.0
        %641 = vmatpush1.xpose.msra.mxu0 0.0
        %642 = vmatprep.subr.mxu0 0.0
        %643 = vmatpush1.xpose.msra.mxu0 0.0
        %644 = vmatprep.subr.mxu0 0.0
        %645 = vmatpush1.xpose.msra.mxu0 0.0
        %646 = vmatprep.subr.mxu0 0.0
        %647 = vmatpush1.xpose.msra.mxu0 0.0
        %648 = vmatprep.subr.mxu0 0.0
        %649 = vmatpush1.xpose.msra.mxu0 0.0
        %650 = vmatprep.subr.mxu0 0.0
        %651 = vmatpush1.xpose.msra.mxu0 0.0
        %652 = vmatprep.subr.mxu0 0.0
        %653 = vmatpush1.xpose.msra.mxu0 0.0
        %654 = vmatprep.subr.mxu0 0.0
        %655 = vmatpush1.xpose.msra.mxu0 0.0
        %656 = vmatprep.subr.mxu0 0.0
        %657 = vmatpush1.xpose.msra.mxu0 0.0
        %658 = vmatprep.subr.mxu0 0.0
        %659 = vmatpush1.xpose.msra.mxu0 0.0
        %660 = vmatprep.subr.mxu0 0.0
        %661 = vmatpush1.xpose.msra.mxu0 0.0
        %662 = vmatprep.mubr.f32.mxu0 0.0
        %663 = vmatmul.mubr.f32.gmra.mrb[0].mxu0 %v593
        %v664 = vpop.f32.mrb[0].mxu0
        %v665 = vadd.f32 0.0, %v664
        %v666 = vpop.f32.mrb[0].mxu0
        %667 = vdwg.mxu0
        %vm668 = vcmp.eq.f32.partialorder %v373, 0.0
        %v669 = vsel %vm668, -1e+20, %v665
        %v670 = vmul.f32 %v669, 0.17677669
        %v671 = vsel %vm376, %v670, -inf
        %672 = vmax.xlane.f32.xlu0 %v671
        %v673 = vpop.xlane.xlu0 %672
        %v674 = vsub.f32 %v670, %v673
        %v675 = vmul.f32 %v674, 1.442695
        %v676 = vpow.pop %v675
        %v677 = vsel %vm376, %v676, 0.0
        %678 = vadd.xlane.f32.xlu0 %v677
        %v679 = vpop.xlane.xlu0 %678
        %v680 = vrcp.pop %v679
        %v681 = vmul.f32 %v676, %v680
        %v683 = vsel %vm376, %v681, 0
        %685 = vmatprep.subr.mxu0 0.0
        %686 = vmatpush1.msra.mxu0 %v589
        %687 = vmatprep.subr.mxu0 0.0
        %688 = vmatpush1.msra.mxu0 0.0
        %689 = vmatprep.subr.mxu0 0.0
        %690 = vmatpush1.msra.mxu0 0.0
        %691 = vmatprep.subr.mxu0 0.0
        %692 = vmatpush1.msra.mxu0 0.0
        %693 = vmatprep.subr.mxu0 0.0
        %694 = vmatpush1.msra.mxu0 0.0
        %695 = vmatprep.subr.mxu0 0.0
        %696 = vmatpush1.msra.mxu0 0.0
        %697 = vmatprep.subr.mxu0 0.0
        %698 = vmatpush1.msra.mxu0 0.0
        %699 = vmatprep.subr.mxu0 0.0
        %700 = vmatpush1.msra.mxu0 0.0
        %701 = vmatprep.subr.mxu0 0.0
        %702 = vmatpush1.msra.mxu0 0.0
        %703 = vmatprep.subr.mxu0 0.0
        %704 = vmatpush1.msra.mxu0 0.0
        %705 = vmatprep.subr.mxu0 0.0
        %706 = vmatpush1.msra.mxu0 0.0
        %707 = vmatprep.subr.mxu0 0.0
        %708 = vmatpush1.msra.mxu0 0.0
        %709 = vmatprep.subr.mxu0 0.0
        %710 = vmatpush1.msra.mxu0 0.0
        %711 = vmatprep.subr.mxu0 0.0
        %712 = vmatpush1.msra.mxu0 0.0
        %713 = vmatprep.subr.mxu0 0.0
        %714 = vmatpush1.msra.mxu0 0.0
        %715 = vmatprep.subr.mxu0 0.0
        %716 = vmatpush1.msra.mxu0 0.0
        %717 = vmatprep.subr.mxu0 0.0
        %718 = vmatpush1.msra.mxu0 0.0
        %719 = vmatprep.subr.mxu0 0.0
        %720 = vmatpush1.msra.mxu0 0.0
        %721 = vmatprep.subr.mxu0 0.0
        %722 = vmatpush1.msra.mxu0 0.0
        %723 = vmatprep.subr.mxu0 0.0
        %724 = vmatpush1.msra.mxu0 0.0
        %725 = vmatprep.subr.mxu0 0.0
        %726 = vmatpush1.msra.mxu0 0.0
        %727 = vmatprep.subr.mxu0 0.0
        %728 = vmatpush1.msra.mxu0 0.0
        %729 = vmatprep.subr.mxu0 0.0
        %730 = vmatpush1.msra.mxu0 0.0
        %731 = vmatprep.subr.mxu0 0.0
        %732 = vmatpush1.msra.mxu0 0.0
        %733 = vmatprep.subr.mxu0 0.0
        %734 = vmatpush1.msra.mxu0 0.0
        %735 = vmatprep.subr.mxu0 0.0
        %736 = vmatpush1.msra.mxu0 0.0
        %737 = vmatprep.subr.mxu0 0.0
        %738 = vmatpush1.msra.mxu0 0.0
        %739 = vmatprep.subr.mxu0 0.0
        %740 = vmatpush1.msra.mxu0 0.0
        %741 = vmatprep.subr.mxu0 0.0
        %742 = vmatpush1.msra.mxu0 0.0
        %743 = vmatprep.subr.mxu0 0.0
        %744 = vmatpush1.msra.mxu0 0.0
        %745 = vmatprep.subr.mxu0 0.0
        %746 = vmatpush1.msra.mxu0 0.0
        %747 = vmatprep.subr.mxu0 0.0
        %748 = vmatpush1.msra.mxu0 0.0
        %749 = vmatprep.mubr.f32.mxu0 0.0
        %750 = vmatmul.mubr.f32.gmra.mrb[0].mxu0 %v683
        %v751 = vpop.f32.mrb[0].mxu0
        %v752 = vadd.f32 0.0, %v751
        %v753 = vpop.f32.mrb[0].mxu0
        %754 = vdwg.mxu0
        %v755 = vld [vmem:[#allocation10] sm:$0xff]
        %s756 = scalar_lea.vmem %s316, 8 [#allocation2]
        %v757 = vld [vmem:[%s756] sm:$0xff]
        %v759 = vsel %vm376, %v757, 0
        %761 = vmatprep.subr.mxu0 0.0
        %762 = vmatpush1.msra.mxu0 %v375
        %763 = vmatprep.subr.mxu0 0.0
        %764 = vmatpush1.msra.mxu0 0.0
        %765 = vmatprep.subr.mxu0 0.0
        %766 = vmatpush1.msra.mxu0 0.0
        %767 = vmatprep.subr.mxu0 0.0
        %768 = vmatpush1.msra.mxu0 0.0
        %769 = vmatprep.subr.mxu0 0.0
        %770 = vmatpush1.msra.mxu0 0.0
        %771 = vmatprep.subr.mxu0 0.0
        %772 = vmatpush1.msra.mxu0 0.0
        %773 = vmatprep.subr.mxu0 0.0
        %774 = vmatpush1.msra.mxu0 0.0
        %775 = vmatprep.subr.mxu0 0.0
        %776 = vmatpush1.msra.mxu0 0.0
        %777 = vmatprep.subr.mxu0 0.0
        %778 = vmatpush1.msra.mxu0 0.0
        %779 = vmatprep.subr.mxu0 0.0
        %780 = vmatpush1.msra.mxu0 0.0
        %781 = vmatprep.subr.mxu0 0.0
        %782 = vmatpush1.msra.mxu0 0.0
        %783 = vmatprep.subr.mxu0 0.0
        %784 = vmatpush1.msra.mxu0 0.0
        %785 = vmatprep.subr.mxu0 0.0
        %786 = vmatpush1.msra.mxu0 0.0
        %787 = vmatprep.subr.mxu0 0.0
        %788 = vmatpush1.msra.mxu0 0.0
        %789 = vmatprep.subr.mxu0 0.0
        %790 = vmatpush1.msra.mxu0 0.0
        %791 = vmatprep.subr.mxu0 0.0
        %792 = vmatpush1.msra.mxu0 0.0
        %793 = vmatprep.subr.mxu0 0.0
        %794 = vmatpush1.msra.mxu0 0.0
        %795 = vmatprep.subr.mxu0 0.0
        %796 = vmatpush1.msra.mxu0 0.0
        %797 = vmatprep.subr.mxu0 0.0
        %798 = vmatpush1.msra.mxu0 0.0
        %799 = vmatprep.subr.mxu0 0.0
        %800 = vmatpush1.msra.mxu0 0.0
        %801 = vmatprep.subr.mxu0 0.0
        %802 = vmatpush1.msra.mxu0 0.0
        %803 = vmatprep.subr.mxu0 0.0
        %804 = vmatpush1.msra.mxu0 0.0
        %805 = vmatprep.subr.mxu0 0.0
        %806 = vmatpush1.msra.mxu0 0.0
        %807 = vmatprep.subr.mxu0 0.0
        %808 = vmatpush1.msra.mxu0 0.0
        %809 = vmatprep.subr.mxu0 0.0
        %810 = vmatpush1.msra.mxu0 0.0
        %811 = vmatprep.subr.mxu0 0.0
        %812 = vmatpush1.msra.mxu0 0.0
        %813 = vmatprep.subr.mxu0 0.0
        %814 = vmatpush1.msra.mxu0 0.0
        %815 = vmatprep.subr.mxu0 0.0
        %816 = vmatpush1.msra.mxu0 0.0
        %817 = vmatprep.subr.mxu0 0.0
        %818 = vmatpush1.msra.mxu0 0.0
        %819 = vmatprep.subr.mxu0 0.0
        %820 = vmatpush1.msra.mxu0 0.0
        %821 = vmatprep.subr.mxu0 0.0
        %822 = vmatpush1.msra.mxu0 0.0
        %823 = vmatprep.subr.mxu0 0.0
        %824 = vmatpush1.msra.mxu0 0.0
        %825 = vmatprep.mubr.f32.mxu0 0.0
        %826 = vmatmul.mubr.f32.gmra.mrb[0].mxu0 %v759
        %v827 = vpop.f32.mrb[0].mxu0
        %v828 = vadd.f32 0.0, %v827
        %v829 = vpop.f32.mrb[0].mxu0
        %830 = vdwg.mxu0
        %831 = vmatprep.subr.mxu0 0.0
        %832 = vmatpush1.msra.mxu0 %v450
        %833 = vmatprep.subr.mxu0 0.0
        %834 = vmatpush1.msra.mxu0 0.0
        %835 = vmatprep.subr.mxu0 0.0
        %836 = vmatpush1.msra.mxu0 0.0
        %837 = vmatprep.subr.mxu0 0.0
        %838 = vmatpush1.msra.mxu0 0.0
        %839 = vmatprep.subr.mxu0 0.0
        %840 = vmatpush1.msra.mxu0 0.0
        %841 = vmatprep.subr.mxu0 0.0
        %842 = vmatpush1.msra.mxu0 0.0
        %843 = vmatprep.subr.mxu0 0.0
        %844 = vmatpush1.msra.mxu0 0.0
        %845 = vmatprep.subr.mxu0 0.0
        %846 = vmatpush1.msra.mxu0 0.0
        %847 = vmatprep.subr.mxu0 0.0
        %848 = vmatpush1.msra.mxu0 0.0
        %849 = vmatprep.subr.mxu0 0.0
        %850 = vmatpush1.msra.mxu0 0.0
        %851 = vmatprep.subr.mxu0 0.0
        %852 = vmatpush1.msra.mxu0 0.0
        %853 = vmatprep.subr.mxu0 0.0
        %854 = vmatpush1.msra.mxu0 0.0
        %855 = vmatprep.subr.mxu0 0.0
        %856 = vmatpush1.msra.mxu0 0.0
        %857 = vmatprep.subr.mxu0 0.0
        %858 = vmatpush1.msra.mxu0 0.0
        %859 = vmatprep.subr.mxu0 0.0
        %860 = vmatpush1.msra.mxu0 0.0
        %861 = vmatprep.subr.mxu0 0.0
        %862 = vmatpush1.msra.mxu0 0.0
        %863 = vmatprep.subr.mxu0 0.0
        %864 = vmatpush1.msra.mxu0 0.0
        %865 = vmatprep.subr.mxu0 0.0
        %866 = vmatpush1.msra.mxu0 0.0
        %867 = vmatprep.subr.mxu0 0.0
        %868 = vmatpush1.msra.mxu0 0.0
        %869 = vmatprep.subr.mxu0 0.0
        %870 = vmatpush1.msra.mxu0 0.0
        %871 = vmatprep.subr.mxu0 0.0
        %872 = vmatpush1.msra.mxu0 0.0
        %873 = vmatprep.subr.mxu0 0.0
        %874 = vmatpush1.msra.mxu0 0.0
        %875 = vmatprep.subr.mxu0 0.0
        %876 = vmatpush1.msra.mxu0 0.0
        %877 = vmatprep.subr.mxu0 0.0
        %878 = vmatpush1.msra.mxu0 0.0
        %879 = vmatprep.subr.mxu0 0.0
        %880 = vmatpush1.msra.mxu0 0.0
        %881 = vmatprep.subr.mxu0 0.0
        %882 = vmatpush1.msra.mxu0 0.0
        %883 = vmatprep.subr.mxu0 0.0
        %884 = vmatpush1.msra.mxu0 0.0
        %885 = vmatprep.subr.mxu0 0.0
        %886 = vmatpush1.msra.mxu0 0.0
        %887 = vmatprep.subr.mxu0 0.0
        %888 = vmatpush1.msra.mxu0 0.0
        %889 = vmatprep.subr.mxu0 0.0
        %890 = vmatpush1.msra.mxu0 0.0
        %891 = vmatprep.subr.mxu0 0.0
        %892 = vmatpush1.msra.mxu0 0.0
        %893 = vmatprep.subr.mxu0 0.0
        %894 = vmatpush1.msra.mxu0 0.0
        %895 = vmatprep.mubr.f32.mxu0 0.0
        %896 = vmatmul.mubr.f32.gmra.mrb[0].mxu0 %v759
        %v897 = vpop.f32.mrb[0].mxu0
        %v898 = vadd.f32 0.0, %v897
        %v899 = vpop.f32.mrb[0].mxu0
        %900 = vdwg.mxu0
        %901 = vmatprep.subr.mxu0 0.0
        %902 = vmatpush1.msra.mxu0 %v521
        %903 = vmatprep.subr.mxu0 0.0
        %904 = vmatpush1.msra.mxu0 0.0
        %905 = vmatprep.subr.mxu0 0.0
        %906 = vmatpush1.msra.mxu0 0.0
        %907 = vmatprep.subr.mxu0 0.0
        %908 = vmatpush1.msra.mxu0 0.0
        %909 = vmatprep.subr.mxu0 0.0
        %910 = vmatpush1.msra.mxu0 0.0
        %911 = vmatprep.subr.mxu0 0.0
        %912 = vmatpush1.msra.mxu0 0.0
        %913 = vmatprep.subr.mxu0 0.0
        %914 = vmatpush1.msra.mxu0 0.0
        %915 = vmatprep.subr.mxu0 0.0
        %916 = vmatpush1.msra.mxu0 0.0
        %917 = vmatprep.subr.mxu0 0.0
        %918 = vmatpush1.msra.mxu0 0.0
        %919 = vmatprep.subr.mxu0 0.0
        %920 = vmatpush1.msra.mxu0 0.0
        %921 = vmatprep.subr.mxu0 0.0
        %922 = vmatpush1.msra.mxu0 0.0
        %923 = vmatprep.subr.mxu0 0.0
        %924 = vmatpush1.msra.mxu0 0.0
        %925 = vmatprep.subr.mxu0 0.0
        %926 = vmatpush1.msra.mxu0 0.0
        %927 = vmatprep.subr.mxu0 0.0
        %928 = vmatpush1.msra.mxu0 0.0
        %929 = vmatprep.subr.mxu0 0.0
        %930 = vmatpush1.msra.mxu0 0.0
        %931 = vmatprep.subr.mxu0 0.0
        %932 = vmatpush1.msra.mxu0 0.0
        %933 = vmatprep.subr.mxu0 0.0
        %934 = vmatpush1.msra.mxu0 0.0
        %935 = vmatprep.subr.mxu0 0.0
        %936 = vmatpush1.msra.mxu0 0.0
        %937 = vmatprep.subr.mxu0 0.0
        %938 = vmatpush1.msra.mxu0 0.0
        %939 = vmatprep.subr.mxu0 0.0
        %940 = vmatpush1.msra.mxu0 0.0
        %941 = vmatprep.subr.mxu0 0.0
        %942 = vmatpush1.msra.mxu0 0.0
        %943 = vmatprep.subr.mxu0 0.0
        %944 = vmatpush1.msra.mxu0 0.0
        %945 = vmatprep.subr.mxu0 0.0
        %946 = vmatpush1.msra.mxu0 0.0
        %947 = vmatprep.subr.mxu0 0.0
        %948 = vmatpush1.msra.mxu0 0.0
        %949 = vmatprep.subr.mxu0 0.0
        %950 = vmatpush1.msra.mxu0 0.0
        %951 = vmatprep.subr.mxu0 0.0
        %952 = vmatpush1.msra.mxu0 0.0
        %953 = vmatprep.subr.mxu0 0.0
        %954 = vmatpush1.msra.mxu0 0.0
        %955 = vmatprep.subr.mxu0 0.0
        %956 = vmatpush1.msra.mxu0 0.0
        %957 = vmatprep.subr.mxu0 0.0
        %958 = vmatpush1.msra.mxu0 0.0
        %959 = vmatprep.subr.mxu0 0.0
        %960 = vmatpush1.msra.mxu0 0.0
        %961 = vmatprep.subr.mxu0 0.0
        %962 = vmatpush1.msra.mxu0 0.0
        %963 = vmatprep.subr.mxu0 0.0
        %964 = vmatpush1.msra.mxu0 0.0
        %965 = vmatprep.mubr.f32.mxu0 0.0
        %966 = vmatmul.mubr.f32.gmra.mrb[0].mxu0 %v759
        %v967 = vpop.f32.mrb[0].mxu0
        %v968 = vadd.f32 0.0, %v967
        %v969 = vpop.f32.mrb[0].mxu0
        %970 = vdwg.mxu0
        %v972 = vsel %vm376, %v828, 0
        %v975 = vsel %vm376, %v898, 0
        %977 = vmatprep.subr.mxu0 0.0
        %978 = vmatpush1.xpose.msra.mxu0 %v975
        %979 = vmatprep.subr.mxu0 0.0
        %980 = vmatpush1.xpose.msra.mxu0 0.0
        %981 = vmatprep.subr.mxu0 0.0
        %982 = vmatpush1.xpose.msra.mxu0 0.0
        %983 = vmatprep.subr.mxu0 0.0
        %984 = vmatpush1.xpose.msra.mxu0 0.0
        %985 = vmatprep.subr.mxu0 0.0
        %986 = vmatpush1.xpose.msra.mxu0 0.0
        %987 = vmatprep.subr.mxu0 0.0
        %988 = vmatpush1.xpose.msra.mxu0 0.0
        %989 = vmatprep.subr.mxu0 0.0
        %990 = vmatpush1.xpose.msra.mxu0 0.0
        %991 = vmatprep.subr.mxu0 0.0
        %992 = vmatpush1.xpose.msra.mxu0 0.0
        %993 = vmatprep.subr.mxu0 0.0
        %994 = vmatpush1.xpose.msra.mxu0 0.0
        %995 = vmatprep.subr.mxu0 0.0
        %996 = vmatpush1.xpose.msra.mxu0 0.0
        %997 = vmatprep.subr.mxu0 0.0
        %998 = vmatpush1.xpose.msra.mxu0 0.0
        %999 = vmatprep.subr.mxu0 0.0
        %1000 = vmatpush1.xpose.msra.mxu0 0.0
        %1001 = vmatprep.subr.mxu0 0.0
        %1002 = vmatpush1.xpose.msra.mxu0 0.0
        %1003 = vmatprep.subr.mxu0 0.0
        %1004 = vmatpush1.xpose.msra.mxu0 0.0
        %1005 = vmatprep.subr.mxu0 0.0
        %1006 = vmatpush1.xpose.msra.mxu0 0.0
        %1007 = vmatprep.subr.mxu0 0.0
        %1008 = vmatpush1.xpose.msra.mxu0 0.0
        %1009 = vmatprep.subr.mxu0 0.0
        %1010 = vmatpush1.xpose.msra.mxu0 0.0
        %1011 = vmatprep.subr.mxu0 0.0
        %1012 = vmatpush1.xpose.msra.mxu0 0.0
        %1013 = vmatprep.subr.mxu0 0.0
        %1014 = vmatpush1.xpose.msra.mxu0 0.0
        %1015 = vmatprep.subr.mxu0 0.0
        %1016 = vmatpush1.xpose.msra.mxu0 0.0
        %1017 = vmatprep.subr.mxu0 0.0
        %1018 = vmatpush1.xpose.msra.mxu0 0.0
        %1019 = vmatprep.subr.mxu0 0.0
        %1020 = vmatpush1.xpose.msra.mxu0 0.0
        %1021 = vmatprep.subr.mxu0 0.0
        %1022 = vmatpush1.xpose.msra.mxu0 0.0
        %1023 = vmatprep.subr.mxu0 0.0
        %1024 = vmatpush1.xpose.msra.mxu0 0.0
        %1025 = vmatprep.subr.mxu0 0.0
        %1026 = vmatpush1.xpose.msra.mxu0 0.0
        %1027 = vmatprep.subr.mxu0 0.0
        %1028 = vmatpush1.xpose.msra.mxu0 0.0
        %1029 = vmatprep.subr.mxu0 0.0
        %1030 = vmatpush1.xpose.msra.mxu0 0.0
        %1031 = vmatprep.subr.mxu0 0.0
        %1032 = vmatpush1.xpose.msra.mxu0 0.0
        %1033 = vmatprep.subr.mxu0 0.0
        %1034 = vmatpush1.xpose.msra.mxu0 0.0
        %1035 = vmatprep.subr.mxu0 0.0
        %1036 = vmatpush1.xpose.msra.mxu0 0.0
        %1037 = vmatprep.subr.mxu0 0.0
        %1038 = vmatpush1.xpose.msra.mxu0 0.0
        %1039 = vmatprep.subr.mxu0 0.0
        %1040 = vmatpush1.xpose.msra.mxu0 0.0
        %1041 = vmatprep.mubr.f32.mxu0 0.0
        %1042 = vmatmul.mubr.f32.gmra.mrb[0].mxu0 %v972
        %v1043 = vpop.f32.mrb[0].mxu0
        %v1044 = vadd.f32 0.0, %v1043
        %v1045 = vpop.f32.mrb[0].mxu0
        %1046 = vdwg.mxu0
        %v1047 = vsel %vm668, -1e+20, %v1044
        %v1048 = vmul.f32 %v1047, 0.17677669
        %v1049 = vsel %vm376, %v1048, -inf
        %1050 = vmax.xlane.f32.xlu0 %v1049
        %v1051 = vpop.xlane.xlu0 %1050
        %v1052 = vsub.f32 %v1048, %v1051
        %v1053 = vmul.f32 %v1052, 1.442695
        %v1054 = vpow.pop %v1053
        %v1055 = vsel %vm376, %v1054, 0.0
        %1056 = vadd.xlane.f32.xlu0 %v1055
        %v1057 = vpop.xlane.xlu0 %1056
        %v1058 = vrcp.pop %v1057
        %v1059 = vmul.f32 %v1054, %v1058
        %v1061 = vsel %vm376, %v1059, 0
        %1063 = vmatprep.subr.mxu0 0.0
        %1064 = vmatpush1.msra.mxu0 %v968
        %1065 = vmatprep.subr.mxu0 0.0
        %1066 = vmatpush1.msra.mxu0 0.0
        %1067 = vmatprep.subr.mxu0 0.0
        %1068 = vmatpush1.msra.mxu0 0.0
        %1069 = vmatprep.subr.mxu0 0.0
        %1070 = vmatpush1.msra.mxu0 0.0
        %1071 = vmatprep.subr.mxu0 0.0
        %1072 = vmatpush1.msra.mxu0 0.0
        %1073 = vmatprep.subr.mxu0 0.0
        %1074 = vmatpush1.msra.mxu0 0.0
        %1075 = vmatprep.subr.mxu0 0.0
        %1076 = vmatpush1.msra.mxu0 0.0
        %1077 = vmatprep.subr.mxu0 0.0
        %1078 = vmatpush1.msra.mxu0 0.0
        %1079 = vmatprep.subr.mxu0 0.0
        %1080 = vmatpush1.msra.mxu0 0.0
        %1081 = vmatprep.subr.mxu0 0.0
        %1082 = vmatpush1.msra.mxu0 0.0
        %1083 = vmatprep.subr.mxu0 0.0
        %1084 = vmatpush1.msra.mxu0 0.0
        %1085 = vmatprep.subr.mxu0 0.0
        %1086 = vmatpush1.msra.mxu0 0.0
        %1087 = vmatprep.subr.mxu0 0.0
        %1088 = vmatpush1.msra.mxu0 0.0
        %1089 = vmatprep.subr.mxu0 0.0
        %1090 = vmatpush1.msra.mxu0 0.0
        %1091 = vmatprep.subr.mxu0 0.0
        %1092 = vmatpush1.msra.mxu0 0.0
        %1093 = vmatprep.subr.mxu0 0.0
        %1094 = vmatpush1.msra.mxu0 0.0
        %1095 = vmatprep.subr.mxu0 0.0
        %1096 = vmatpush1.msra.mxu0 0.0
        %1097 = vmatprep.subr.mxu0 0.0
        %1098 = vmatpush1.msra.mxu0 0.0
        %1099 = vmatprep.subr.mxu0 0.0
        %1100 = vmatpush1.msra.mxu0 0.0
        %1101 = vmatprep.subr.mxu0 0.0
        %1102 = vmatpush1.msra.mxu0 0.0
        %1103 = vmatprep.subr.mxu0 0.0
        %1104 = vmatpush1.msra.mxu0 0.0
        %1105 = vmatprep.subr.mxu0 0.0
        %1106 = vmatpush1.msra.mxu0 0.0
        %1107 = vmatprep.subr.mxu0 0.0
        %1108 = vmatpush1.msra.mxu0 0.0
        %1109 = vmatprep.subr.mxu0 0.0
        %1110 = vmatpush1.msra.mxu0 0.0
        %1111 = vmatprep.subr.mxu0 0.0
        %1112 = vmatpush1.msra.mxu0 0.0
        %1113 = vmatprep.subr.mxu0 0.0
        %1114 = vmatpush1.msra.mxu0 0.0
        %1115 = vmatprep.subr.mxu0 0.0
        %1116 = vmatpush1.msra.mxu0 0.0
        %1117 = vmatprep.subr.mxu0 0.0
        %1118 = vmatpush1.msra.mxu0 0.0
        %1119 = vmatprep.subr.mxu0 0.0
        %1120 = vmatpush1.msra.mxu0 0.0
        %1121 = vmatprep.subr.mxu0 0.0
        %1122 = vmatpush1.msra.mxu0 0.0
        %1123 = vmatprep.subr.mxu0 0.0
        %1124 = vmatpush1.msra.mxu0 0.0
        %1125 = vmatprep.subr.mxu0 0.0
        %1126 = vmatpush1.msra.mxu0 0.0
        %1127 = vmatprep.mubr.f32.mxu0 0.0
        %1128 = vmatmul.mubr.f32.gmra.mrb[0].mxu0 %v1061
        %v1129 = vpop.f32.mrb[0].mxu0
        %v1130 = vadd.f32 0.0, %v1129
        %v1131 = vpop.f32.mrb[0].mxu0
        %1132 = vdwg.mxu0
        %v1133 = vld [vmem:[#allocation10 + $0x8] sm:$0xff]
        %v1135 = vsel %vm376, %v1130, 0
        %1137 = vmatprep.subr.mxu0 0.0
        %1138 = vmatpush1.msra.mxu0 %v1133
        %1139 = vmatprep.subr.mxu0 0.0
        %1140 = vmatpush1.msra.mxu0 0.0
        %1141 = vmatprep.subr.mxu0 0.0
        %1142 = vmatpush1.msra.mxu0 0.0
        %1143 = vmatprep.subr.mxu0 0.0
        %1144 = vmatpush1.msra.mxu0 0.0
        %1145 = vmatprep.subr.mxu0 0.0
        %1146 = vmatpush1.msra.mxu0 0.0
        %1147 = vmatprep.subr.mxu0 0.0
        %1148 = vmatpush1.msra.mxu0 0.0
        %1149 = vmatprep.subr.mxu0 0.0
        %1150 = vmatpush1.msra.mxu0 0.0
        %1151 = vmatprep.subr.mxu0 0.0
        %1152 = vmatpush1.msra.mxu0 0.0
        %1153 = vmatprep.subr.mxu0 0.0
        %1154 = vmatpush1.msra.mxu0 0.0
        %1155 = vmatprep.subr.mxu0 0.0
        %1156 = vmatpush1.msra.mxu0 0.0
        %1157 = vmatprep.subr.mxu0 0.0
        %1158 = vmatpush1.msra.mxu0 0.0
        %1159 = vmatprep.subr.mxu0 0.0
        %1160 = vmatpush1.msra.mxu0 0.0
        %1161 = vmatprep.subr.mxu0 0.0
        %1162 = vmatpush1.msra.mxu0 0.0
        %1163 = vmatprep.subr.mxu0 0.0
        %1164 = vmatpush1.msra.mxu0 0.0
        %1165 = vmatprep.subr.mxu0 0.0
        %1166 = vmatpush1.msra.mxu0 0.0
        %1167 = vmatprep.subr.mxu0 0.0
        %1168 = vmatpush1.msra.mxu0 0.0
        %1169 = vmatprep.subr.mxu0 0.0
        %1170 = vmatpush1.msra.mxu0 0.0
        %1171 = vmatprep.subr.mxu0 0.0
        %1172 = vmatpush1.msra.mxu0 0.0
        %1173 = vmatprep.subr.mxu0 0.0
        %1174 = vmatpush1.msra.mxu0 0.0
        %1175 = vmatprep.subr.mxu0 0.0
        %1176 = vmatpush1.msra.mxu0 0.0
        %1177 = vmatprep.subr.mxu0 0.0
        %1178 = vmatpush1.msra.mxu0 0.0
        %1179 = vmatprep.subr.mxu0 0.0
        %1180 = vmatpush1.msra.mxu0 0.0
        %1181 = vmatprep.subr.mxu0 0.0
        %1182 = vmatpush1.msra.mxu0 0.0
        %1183 = vmatprep.subr.mxu0 0.0
        %1184 = vmatpush1.msra.mxu0 0.0
        %1185 = vmatprep.subr.mxu0 0.0
        %1186 = vmatpush1.msra.mxu0 0.0
        %1187 = vmatprep.subr.mxu0 0.0
        %1188 = vmatpush1.msra.mxu0 0.0
        %1189 = vmatprep.subr.mxu0 0.0
        %1190 = vmatpush1.msra.mxu0 0.0
        %1191 = vmatprep.subr.mxu0 0.0
        %1192 = vmatpush1.msra.mxu0 0.0
        %1193 = vmatprep.subr.mxu0 0.0
        %1194 = vmatpush1.msra.mxu0 0.0
        %1195 = vmatprep.subr.mxu0 0.0
        %1196 = vmatpush1.msra.mxu0 0.0
        %1197 = vmatprep.subr.mxu0 0.0
        %1198 = vmatpush1.msra.mxu0 0.0
        %1199 = vmatprep.subr.mxu0 0.0
        %1200 = vmatpush1.msra.mxu0 0.0
        %1201 = vmatprep.mubr.f32.mxu0 0.0
        %1202 = vmatmul.mubr.f32.gmra.mrb[0].mxu0 %v1135
        %v1203 = vpop.f32.mrb[0].mxu0
        %v1204 = vadd.f32 0.0, %v1203
        %v1205 = vpop.f32.mrb[0].mxu0
        %1206 = vdwg.mxu0
        %v1208 = vsel %vm376, %v752, 0
        %1210 = vmatprep.subr.mxu0 0.0
        %1211 = vmatpush1.msra.mxu0 %v755
        %1212 = vmatprep.subr.mxu0 0.0
        %1213 = vmatpush1.msra.mxu0 0.0
        %1214 = vmatprep.subr.mxu0 0.0
        %1215 = vmatpush1.msra.mxu0 0.0
        %1216 = vmatprep.subr.mxu0 0.0
        %1217 = vmatpush1.msra.mxu0 0.0
        %1218 = vmatprep.subr.mxu0 0.0
        %1219 = vmatpush1.msra.mxu0 0.0
        %1220 = vmatprep.subr.mxu0 0.0
        %1221 = vmatpush1.msra.mxu0 0.0
        %1222 = vmatprep.subr.mxu0 0.0
        %1223 = vmatpush1.msra.mxu0 0.0
        %1224 = vmatprep.subr.mxu0 0.0
        %1225 = vmatpush1.msra.mxu0 0.0
        %1226 = vmatprep.subr.mxu0 0.0
        %1227 = vmatpush1.msra.mxu0 0.0
        %1228 = vmatprep.subr.mxu0 0.0
        %1229 = vmatpush1.msra.mxu0 0.0
        %1230 = vmatprep.subr.mxu0 0.0
        %1231 = vmatpush1.msra.mxu0 0.0
        %1232 = vmatprep.subr.mxu0 0.0
        %1233 = vmatpush1.msra.mxu0 0.0
        %1234 = vmatprep.subr.mxu0 0.0
        %1235 = vmatpush1.msra.mxu0 0.0
        %1236 = vmatprep.subr.mxu0 0.0
        %1237 = vmatpush1.msra.mxu0 0.0
        %1238 = vmatprep.subr.mxu0 0.0
        %1239 = vmatpush1.msra.mxu0 0.0
        %1240 = vmatprep.subr.mxu0 0.0
        %1241 = vmatpush1.msra.mxu0 0.0
        %1242 = vmatprep.subr.mxu0 0.0
        %1243 = vmatpush1.msra.mxu0 0.0
        %1244 = vmatprep.subr.mxu0 0.0
        %1245 = vmatpush1.msra.mxu0 0.0
        %1246 = vmatprep.subr.mxu0 0.0
        %1247 = vmatpush1.msra.mxu0 0.0
        %1248 = vmatprep.subr.mxu0 0.0
        %1249 = vmatpush1.msra.mxu0 0.0
        %1250 = vmatprep.subr.mxu0 0.0
        %1251 = vmatpush1.msra.mxu0 0.0
        %1252 = vmatprep.subr.mxu0 0.0
        %1253 = vmatpush1.msra.mxu0 0.0
        %1254 = vmatprep.subr.mxu0 0.0
        %1255 = vmatpush1.msra.mxu0 0.0
        %1256 = vmatprep.subr.mxu0 0.0
        %1257 = vmatpush1.msra.mxu0 0.0
        %1258 = vmatprep.subr.mxu0 0.0
        %1259 = vmatpush1.msra.mxu0 0.0
        %1260 = vmatprep.subr.mxu0 0.0
        %1261 = vmatpush1.msra.mxu0 0.0
        %1262 = vmatprep.subr.mxu0 0.0
        %1263 = vmatpush1.msra.mxu0 0.0
        %1264 = vmatprep.subr.mxu0 0.0
        %1265 = vmatpush1.msra.mxu0 0.0
        %1266 = vmatprep.subr.mxu0 0.0
        %1267 = vmatpush1.msra.mxu0 0.0
        %1268 = vmatprep.subr.mxu0 0.0
        %1269 = vmatpush1.msra.mxu0 0.0
        %1270 = vmatprep.subr.mxu0 0.0
        %1271 = vmatpush1.msra.mxu0 0.0
        %1272 = vmatprep.subr.mxu0 0.0
        %1273 = vmatpush1.msra.mxu0 0.0
        %1274 = vmatprep.mubr.f32.mxu0 0.0
        %1275 = vmatmul.mubr.f32.gmra.mrb[0].mxu0 %v1208
        %v1276 = vpop.f32.mrb[0].mxu0
        %v1277 = vadd.f32 %v1204, %v1276
        %v1278 = vpop.f32.mrb[0].mxu0
        %1279 = vdwg.mxu0
        %s1280 = scalar_lea.vmem %s316, 16 [#allocation2]
        %v1281 = vld [vmem:[%s1280] sm:$0xff]
        %v1283 = vsel %vm376, %v1281, 0
        %1285 = vmatprep.subr.mxu0 0.0
        %1286 = vmatpush1.msra.mxu0 %v375
        %1287 = vmatprep.subr.mxu0 0.0
        %1288 = vmatpush1.msra.mxu0 0.0
        %1289 = vmatprep.subr.mxu0 0.0
        %1290 = vmatpush1.msra.mxu0 0.0
        %1291 = vmatprep.subr.mxu0 0.0
        %1292 = vmatpush1.msra.mxu0 0.0
        %1293 = vmatprep.subr.mxu0 0.0
        %1294 = vmatpush1.msra.mxu0 0.0
        %1295 = vmatprep.subr.mxu0 0.0
        %1296 = vmatpush1.msra.mxu0 0.0
        %1297 = vmatprep.subr.mxu0 0.0
        %1298 = vmatpush1.msra.mxu0 0.0
        %1299 = vmatprep.subr.mxu0 0.0
        %1300 = vmatpush1.msra.mxu0 0.0
        %1301 = vmatprep.subr.mxu0 0.0
        %1302 = vmatpush1.msra.mxu0 0.0
        %1303 = vmatprep.subr.mxu0 0.0
        %1304 = vmatpush1.msra.mxu0 0.0
        %1305 = vmatprep.subr.mxu0 0.0
        %1306 = vmatpush1.msra.mxu0 0.0
        %1307 = vmatprep.subr.mxu0 0.0
        %1308 = vmatpush1.msra.mxu0 0.0
        %1309 = vmatprep.subr.mxu0 0.0
        %1310 = vmatpush1.msra.mxu0 0.0
        %1311 = vmatprep.subr.mxu0 0.0
        %1312 = vmatpush1.msra.mxu0 0.0
        %1313 = vmatprep.subr.mxu0 0.0
        %1314 = vmatpush1.msra.mxu0 0.0
        %1315 = vmatprep.subr.mxu0 0.0
        %1316 = vmatpush1.msra.mxu0 0.0
        %1317 = vmatprep.subr.mxu0 0.0
        %1318 = vmatpush1.msra.mxu0 0.0
        %1319 = vmatprep.subr.mxu0 0.0
        %1320 = vmatpush1.msra.mxu0 0.0
        %1321 = vmatprep.subr.mxu0 0.0
        %1322 = vmatpush1.msra.mxu0 0.0
        %1323 = vmatprep.subr.mxu0 0.0
        %1324 = vmatpush1.msra.mxu0 0.0
        %1325 = vmatprep.subr.mxu0 0.0
        %1326 = vmatpush1.msra.mxu0 0.0
        %1327 = vmatprep.subr.mxu0 0.0
        %1328 = vmatpush1.msra.mxu0 0.0
        %1329 = vmatprep.subr.mxu0 0.0
        %1330 = vmatpush1.msra.mxu0 0.0
        %1331 = vmatprep.subr.mxu0 0.0
        %1332 = vmatpush1.msra.mxu0 0.0
        %1333 = vmatprep.subr.mxu0 0.0
        %1334 = vmatpush1.msra.mxu0 0.0
        %1335 = vmatprep.subr.mxu0 0.0
        %1336 = vmatpush1.msra.mxu0 0.0
        %1337 = vmatprep.subr.mxu0 0.0
        %1338 = vmatpush1.msra.mxu0 0.0
        %1339 = vmatprep.subr.mxu0 0.0
        %1340 = vmatpush1.msra.mxu0 0.0
        %1341 = vmatprep.subr.mxu0 0.0
        %1342 = vmatpush1.msra.mxu0 0.0
        %1343 = vmatprep.subr.mxu0 0.0
        %1344 = vmatpush1.msra.mxu0 0.0
        %1345 = vmatprep.subr.mxu0 0.0
        %1346 = vmatpush1.msra.mxu0 0.0
        %1347 = vmatprep.subr.mxu0 0.0
        %1348 = vmatpush1.msra.mxu0 0.0
        %1349 = vmatprep.mubr.f32.mxu0 0.0
        %1350 = vmatmul.mubr.f32.gmra.mrb[0].mxu0 %v1283
        %v1351 = vpop.f32.mrb[0].mxu0
        %v1352 = vadd.f32 0.0, %v1351
        %v1353 = vpop.f32.mrb[0].mxu0
        %1354 = vdwg.mxu0
        %1355 = vmatprep.subr.mxu0 0.0
        %1356 = vmatpush1.msra.mxu0 %v450
        %1357 = vmatprep.subr.mxu0 0.0
        %1358 = vmatpush1.msra.mxu0 0.0
        %1359 = vmatprep.subr.mxu0 0.0
        %1360 = vmatpush1.msra.mxu0 0.0
        %1361 = vmatprep.subr.mxu0 0.0
        %1362 = vmatpush1.msra.mxu0 0.0
        %1363 = vmatprep.subr.mxu0 0.0
        %1364 = vmatpush1.msra.mxu0 0.0
        %1365 = vmatprep.subr.mxu0 0.0
        %1366 = vmatpush1.msra.mxu0 0.0
        %1367 = vmatprep.subr.mxu0 0.0
        %1368 = vmatpush1.msra.mxu0 0.0
        %1369 = vmatprep.subr.mxu0 0.0
        %1370 = vmatpush1.msra.mxu0 0.0
        %1371 = vmatprep.subr.mxu0 0.0
        %1372 = vmatpush1.msra.mxu0 0.0
        %1373 = vmatprep.subr.mxu0 0.0
        %1374 = vmatpush1.msra.mxu0 0.0
        %1375 = vmatprep.subr.mxu0 0.0
        %1376 = vmatpush1.msra.mxu0 0.0
        %1377 = vmatprep.subr.mxu0 0.0
        %1378 = vmatpush1.msra.mxu0 0.0
        %1379 = vmatprep.subr.mxu0 0.0
        %1380 = vmatpush1.msra.mxu0 0.0
        %1381 = vmatprep.subr.mxu0 0.0
        %1382 = vmatpush1.msra.mxu0 0.0
        %1383 = vmatprep.subr.mxu0 0.0
        %1384 = vmatpush1.msra.mxu0 0.0
        %1385 = vmatprep.subr.mxu0 0.0
        %1386 = vmatpush1.msra.mxu0 0.0
        %1387 = vmatprep.subr.mxu0 0.0
        %1388 = vmatpush1.msra.mxu0 0.0
        %1389 = vmatprep.subr.mxu0 0.0
        %1390 = vmatpush1.msra.mxu0 0.0
        %1391 = vmatprep.subr.mxu0 0.0
        %1392 = vmatpush1.msra.mxu0 0.0
        %1393 = vmatprep.subr.mxu0 0.0
        %1394 = vmatpush1.msra.mxu0 0.0
        %1395 = vmatprep.subr.mxu0 0.0
        %1396 = vmatpush1.msra.mxu0 0.0
        %1397 = vmatprep.subr.mxu0 0.0
        %1398 = vmatpush1.msra.mxu0 0.0
        %1399 = vmatprep.subr.mxu0 0.0
        %1400 = vmatpush1.msra.mxu0 0.0
        %1401 = vmatprep.subr.mxu0 0.0
        %1402 = vmatpush1.msra.mxu0 0.0
        %1403 = vmatprep.subr.mxu0 0.0
        %1404 = vmatpush1.msra.mxu0 0.0
        %1405 = vmatprep.subr.mxu0 0.0
        %1406 = vmatpush1.msra.mxu0 0.0
        %1407 = vmatprep.subr.mxu0 0.0
        %1408 = vmatpush1.msra.mxu0 0.0
        %1409 = vmatprep.subr.mxu0 0.0
        %1410 = vmatpush1.msra.mxu0 0.0
        %1411 = vmatprep.subr.mxu0 0.0
        %1412 = vmatpush1.msra.mxu0 0.0
        %1413 = vmatprep.subr.mxu0 0.0
        %1414 = vmatpush1.msra.mxu0 0.0
        %1415 = vmatprep.subr.mxu0 0.0
        %1416 = vmatpush1.msra.mxu0 0.0
        %1417 = vmatprep.subr.mxu0 0.0
        %1418 = vmatpush1.msra.mxu0 0.0
        %1419 = vmatprep.mubr.f32.mxu0 0.0
        %1420 = vmatmul.mubr.f32.gmra.mrb[0].mxu0 %v1283
        %v1421 = vpop.f32.mrb[0].mxu0
        %v1422 = vadd.f32 0.0, %v1421
        %v1423 = vpop.f32.mrb[0].mxu0
        %1424 = vdwg.mxu0
        %1425 = vmatprep.subr.mxu0 0.0
        %1426 = vmatpush1.msra.mxu0 %v521
        %1427 = vmatprep.subr.mxu0 0.0
        %1428 = vmatpush1.msra.mxu0 0.0
        %1429 = vmatprep.subr.mxu0 0.0
        %1430 = vmatpush1.msra.mxu0 0.0
        %1431 = vmatprep.subr.mxu0 0.0
        %1432 = vmatpush1.msra.mxu0 0.0
        %1433 = vmatprep.subr.mxu0 0.0
        %1434 = vmatpush1.msra.mxu0 0.0
        %1435 = vmatprep.subr.mxu0 0.0
        %1436 = vmatpush1.msra.mxu0 0.0
        %1437 = vmatprep.subr.mxu0 0.0
        %1438 = vmatpush1.msra.mxu0 0.0
        %1439 = vmatprep.subr.mxu0 0.0
        %1440 = vmatpush1.msra.mxu0 0.0
        %1441 = vmatprep.subr.mxu0 0.0
        %1442 = vmatpush1.msra.mxu0 0.0
        %1443 = vmatprep.subr.mxu0 0.0
        %1444 = vmatpush1.msra.mxu0 0.0
        %1445 = vmatprep.subr.mxu0 0.0
        %1446 = vmatpush1.msra.mxu0 0.0
        %1447 = vmatprep.subr.mxu0 0.0
        %1448 = vmatpush1.msra.mxu0 0.0
        %1449 = vmatprep.subr.mxu0 0.0
        %1450 = vmatpush1.msra.mxu0 0.0
        %1451 = vmatprep.subr.mxu0 0.0
        %1452 = vmatpush1.msra.mxu0 0.0
        %1453 = vmatprep.subr.mxu0 0.0
        %1454 = vmatpush1.msra.mxu0 0.0
        %1455 = vmatprep.subr.mxu0 0.0
        %1456 = vmatpush1.msra.mxu0 0.0
        %1457 = vmatprep.subr.mxu0 0.0
        %1458 = vmatpush1.msra.mxu0 0.0
        %1459 = vmatprep.subr.mxu0 0.0
        %1460 = vmatpush1.msra.mxu0 0.0
        %1461 = vmatprep.subr.mxu0 0.0
        %1462 = vmatpush1.msra.mxu0 0.0
        %1463 = vmatprep.subr.mxu0 0.0
        %1464 = vmatpush1.msra.mxu0 0.0
        %1465 = vmatprep.subr.mxu0 0.0
        %1466 = vmatpush1.msra.mxu0 0.0
        %1467 = vmatprep.subr.mxu0 0.0
        %1468 = vmatpush1.msra.mxu0 0.0
        %1469 = vmatprep.subr.mxu0 0.0
        %1470 = vmatpush1.msra.mxu0 0.0
        %1471 = vmatprep.subr.mxu0 0.0
        %1472 = vmatpush1.msra.mxu0 0.0
        %1473 = vmatprep.subr.mxu0 0.0
        %1474 = vmatpush1.msra.mxu0 0.0
        %1475 = vmatprep.subr.mxu0 0.0
        %1476 = vmatpush1.msra.mxu0 0.0
        %1477 = vmatprep.subr.mxu0 0.0
        %1478 = vmatpush1.msra.mxu0 0.0
        %1479 = vmatprep.subr.mxu0 0.0
        %1480 = vmatpush1.msra.mxu0 0.0
        %1481 = vmatprep.subr.mxu0 0.0
        %1482 = vmatpush1.msra.mxu0 0.0
        %1483 = vmatprep.subr.mxu0 0.0
        %1484 = vmatpush1.msra.mxu0 0.0
        %1485 = vmatprep.subr.mxu0 0.0
        %1486 = vmatpush1.msra.mxu0 0.0
        %1487 = vmatprep.subr.mxu0 0.0
        %1488 = vmatpush1.msra.mxu0 0.0
        %1489 = vmatprep.mubr.f32.mxu0 0.0
        %1490 = vmatmul.mubr.f32.gmra.mrb[0].mxu0 %v1283
        %v1491 = vpop.f32.mrb[0].mxu0
        %v1492 = vadd.f32 0.0, %v1491
        %v1493 = vpop.f32.mrb[0].mxu0
        %1494 = vdwg.mxu0
        %v1496 = vsel %vm376, %v1352, 0
        %v1499 = vsel %vm376, %v1422, 0
        %1501 = vmatprep.subr.mxu0 0.0
        %1502 = vmatpush1.xpose.msra.mxu0 %v1499
        %1503 = vmatprep.subr.mxu0 0.0
        %1504 = vmatpush1.xpose.msra.mxu0 0.0
        %1505 = vmatprep.subr.mxu0 0.0
        %1506 = vmatpush1.xpose.msra.mxu0 0.0
        %1507 = vmatprep.subr.mxu0 0.0
        %1508 = vmatpush1.xpose.msra.mxu0 0.0
        %1509 = vmatprep.subr.mxu0 0.0
        %1510 = vmatpush1.xpose.msra.mxu0 0.0
        %1511 = vmatprep.subr.mxu0 0.0
        %1512 = vmatpush1.xpose.msra.mxu0 0.0
        %1513 = vmatprep.subr.mxu0 0.0
        %1514 = vmatpush1.xpose.msra.mxu0 0.0
        %1515 = vmatprep.subr.mxu0 0.0
        %1516 = vmatpush1.xpose.msra.mxu0 0.0
        %1517 = vmatprep.subr.mxu0 0.0
        %1518 = vmatpush1.xpose.msra.mxu0 0.0
        %1519 = vmatprep.subr.mxu0 0.0
        %1520 = vmatpush1.xpose.msra.mxu0 0.0
        %1521 = vmatprep.subr.mxu0 0.0
        %1522 = vmatpush1.xpose.msra.mxu0 0.0
        %1523 = vmatprep.subr.mxu0 0.0
        %1524 = vmatpush1.xpose.msra.mxu0 0.0
        %1525 = vmatprep.subr.mxu0 0.0
        %1526 = vmatpush1.xpose.msra.mxu0 0.0
        %1527 = vmatprep.subr.mxu0 0.0
        %1528 = vmatpush1.xpose.msra.mxu0 0.0
        %1529 = vmatprep.subr.mxu0 0.0
        %1530 = vmatpush1.xpose.msra.mxu0 0.0
        %1531 = vmatprep.subr.mxu0 0.0
        %1532 = vmatpush1.xpose.msra.mxu0 0.0
        %1533 = vmatprep.subr.mxu0 0.0
        %1534 = vmatpush1.xpose.msra.mxu0 0.0
        %1535 = vmatprep.subr.mxu0 0.0
        %1536 = vmatpush1.xpose.msra.mxu0 0.0
        %1537 = vmatprep.subr.mxu0 0.0
        %1538 = vmatpush1.xpose.msra.mxu0 0.0
        %1539 = vmatprep.subr.mxu0 0.0
        %1540 = vmatpush1.xpose.msra.mxu0 0.0
        %1541 = vmatprep.subr.mxu0 0.0
        %1542 = vmatpush1.xpose.msra.mxu0 0.0
        %1543 = vmatprep.subr.mxu0 0.0
        %1544 = vmatpush1.xpose.msra.mxu0 0.0
        %1545 = vmatprep.subr.mxu0 0.0
        %1546 = vmatpush1.xpose.msra.mxu0 0.0
        %1547 = vmatprep.subr.mxu0 0.0
        %1548 = vmatpush1.xpose.msra.mxu0 0.0
        %1549 = vmatprep.subr.mxu0 0.0
        %1550 = vmatpush1.xpose.msra.mxu0 0.0
        %1551 = vmatprep.subr.mxu0 0.0
        %1552 = vmatpush1.xpose.msra.mxu0 0.0
        %1553 = vmatprep.subr.mxu0 0.0
        %1554 = vmatpush1.xpose.msra.mxu0 0.0
        %1555 = vmatprep.subr.mxu0 0.0
        %1556 = vmatpush1.xpose.msra.mxu0 0.0
        %1557 = vmatprep.subr.mxu0 0.0
        %1558 = vmatpush1.xpose.msra.mxu0 0.0
        %1559 = vmatprep.subr.mxu0 0.0
        %1560 = vmatpush1.xpose.msra.mxu0 0.0
        %1561 = vmatprep.subr.mxu0 0.0
        %1562 = vmatpush1.xpose.msra.mxu0 0.0
        %1563 = vmatprep.subr.mxu0 0.0
        %1564 = vmatpush1.xpose.msra.mxu0 0.0
        %1565 = vmatprep.mubr.f32.mxu0 0.0
        %1566 = vmatmul.mubr.f32.gmra.mrb[0].mxu0 %v1496
        %v1567 = vpop.f32.mrb[0].mxu0
        %v1568 = vadd.f32 0.0, %v1567
        %v1569 = vpop.f32.mrb[0].mxu0
        %1570 = vdwg.mxu0
        %v1571 = vsel %vm668, -1e+20, %v1568
        %v1572 = vmul.f32 %v1571, 0.17677669
        %v1573 = vsel %vm376, %v1572, -inf
        %1574 = vmax.xlane.f32.xlu0 %v1573
        %v1575 = vpop.xlane.xlu0 %1574
        %v1576 = vsub.f32 %v1572, %v1575
        %v1577 = vmul.f32 %v1576, 1.442695
        %v1578 = vpow.pop %v1577
        %v1579 = vsel %vm376, %v1578, 0.0
        %1580 = vadd.xlane.f32.xlu0 %v1579
        %v1581 = vpop.xlane.xlu0 %1580
        %v1582 = vrcp.pop %v1581
        %v1583 = vmul.f32 %v1578, %v1582
        %v1585 = vsel %vm376, %v1583, 0
        %1587 = vmatprep.subr.mxu0 0.0
        %1588 = vmatpush1.msra.mxu0 %v1492
        %1589 = vmatprep.subr.mxu0 0.0
        %1590 = vmatpush1.msra.mxu0 0.0
        %1591 = vmatprep.subr.mxu0 0.0
        %1592 = vmatpush1.msra.mxu0 0.0
        %1593 = vmatprep.subr.mxu0 0.0
        %1594 = vmatpush1.msra.mxu0 0.0
        %1595 = vmatprep.subr.mxu0 0.0
        %1596 = vmatpush1.msra.mxu0 0.0
        %1597 = vmatprep.subr.mxu0 0.0
        %1598 = vmatpush1.msra.mxu0 0.0
        %1599 = vmatprep.subr.mxu0 0.0
        %1600 = vmatpush1.msra.mxu0 0.0
        %1601 = vmatprep.subr.mxu0 0.0
        %1602 = vmatpush1.msra.mxu0 0.0
        %1603 = vmatprep.subr.mxu0 0.0
        %1604 = vmatpush1.msra.mxu0 0.0
        %1605 = vmatprep.subr.mxu0 0.0
        %1606 = vmatpush1.msra.mxu0 0.0
        %1607 = vmatprep.subr.mxu0 0.0
        %1608 = vmatpush1.msra.mxu0 0.0
        %1609 = vmatprep.subr.mxu0 0.0
        %1610 = vmatpush1.msra.mxu0 0.0
        %1611 = vmatprep.subr.mxu0 0.0
        %1612 = vmatpush1.msra.mxu0 0.0
        %1613 = vmatprep.subr.mxu0 0.0
        %1614 = vmatpush1.msra.mxu0 0.0
        %1615 = vmatprep.subr.mxu0 0.0
        %1616 = vmatpush1.msra.mxu0 0.0
        %1617 = vmatprep.subr.mxu0 0.0
        %1618 = vmatpush1.msra.mxu0 0.0
        %1619 = vmatprep.subr.mxu0 0.0
        %1620 = vmatpush1.msra.mxu0 0.0
        %1621 = vmatprep.subr.mxu0 0.0
        %1622 = vmatpush1.msra.mxu0 0.0
        %1623 = vmatprep.subr.mxu0 0.0
        %1624 = vmatpush1.msra.mxu0 0.0
        %1625 = vmatprep.subr.mxu0 0.0
        %1626 = vmatpush1.msra.mxu0 0.0
        %1627 = vmatprep.subr.mxu0 0.0
        %1628 = vmatpush1.msra.mxu0 0.0
        %1629 = vmatprep.subr.mxu0 0.0
        %1630 = vmatpush1.msra.mxu0 0.0
        %1631 = vmatprep.subr.mxu0 0.0
        %1632 = vmatpush1.msra.mxu0 0.0
        %1633 = vmatprep.subr.mxu0 0.0
        %1634 = vmatpush1.msra.mxu0 0.0
        %1635 = vmatprep.subr.mxu0 0.0
        %1636 = vmatpush1.msra.mxu0 0.0
        %1637 = vmatprep.subr.mxu0 0.0
        %1638 = vmatpush1.msra.mxu0 0.0
        %1639 = vmatprep.subr.mxu0 0.0
        %1640 = vmatpush1.msra.mxu0 0.0
        %1641 = vmatprep.subr.mxu0 0.0
        %1642 = vmatpush1.msra.mxu0 0.0
        %1643 = vmatprep.subr.mxu0 0.0
        %1644 = vmatpush1.msra.mxu0 0.0
        %1645 = vmatprep.subr.mxu0 0.0
        %1646 = vmatpush1.msra.mxu0 0.0
        %1647 = vmatprep.subr.mxu0 0.0
        %1648 = vmatpush1.msra.mxu0 0.0
        %1649 = vmatprep.subr.mxu0 0.0
        %1650 = vmatpush1.msra.mxu0 0.0
        %1651 = vmatprep.mubr.f32.mxu0 0.0
        %1652 = vmatmul.mubr.f32.gmra.mrb[0].mxu0 %v1585
        %v1653 = vpop.f32.mrb[0].mxu0
        %v1654 = vadd.f32 0.0, %v1653
        %v1655 = vpop.f32.mrb[0].mxu0
        %1656 = vdwg.mxu0
        %v1657 = vld [vmem:[#allocation10 + $0x10] sm:$0xff]
        %v1659 = vsel %vm376, %v1654, 0
        %1661 = vmatprep.subr.mxu0 0.0
        %1662 = vmatpush1.msra.mxu0 %v1657
        %1663 = vmatprep.subr.mxu0 0.0
        %1664 = vmatpush1.msra.mxu0 0.0
        %1665 = vmatprep.subr.mxu0 0.0
        %1666 = vmatpush1.msra.mxu0 0.0
        %1667 = vmatprep.subr.mxu0 0.0
        %1668 = vmatpush1.msra.mxu0 0.0
        %1669 = vmatprep.subr.mxu0 0.0
        %1670 = vmatpush1.msra.mxu0 0.0
        %1671 = vmatprep.subr.mxu0 0.0
        %1672 = vmatpush1.msra.mxu0 0.0
        %1673 = vmatprep.subr.mxu0 0.0
        %1674 = vmatpush1.msra.mxu0 0.0
        %1675 = vmatprep.subr.mxu0 0.0
        %1676 = vmatpush1.msra.mxu0 0.0
        %1677 = vmatprep.subr.mxu0 0.0
        %1678 = vmatpush1.msra.mxu0 0.0
        %1679 = vmatprep.subr.mxu0 0.0
        %1680 = vmatpush1.msra.mxu0 0.0
        %1681 = vmatprep.subr.mxu0 0.0
        %1682 = vmatpush1.msra.mxu0 0.0
        %1683 = vmatprep.subr.mxu0 0.0
        %1684 = vmatpush1.msra.mxu0 0.0
        %1685 = vmatprep.subr.mxu0 0.0
        %1686 = vmatpush1.msra.mxu0 0.0
        %1687 = vmatprep.subr.mxu0 0.0
        %1688 = vmatpush1.msra.mxu0 0.0
        %1689 = vmatprep.subr.mxu0 0.0
        %1690 = vmatpush1.msra.mxu0 0.0
        %1691 = vmatprep.subr.mxu0 0.0
        %1692 = vmatpush1.msra.mxu0 0.0
        %1693 = vmatprep.subr.mxu0 0.0
        %1694 = vmatpush1.msra.mxu0 0.0
        %1695 = vmatprep.subr.mxu0 0.0
        %1696 = vmatpush1.msra.mxu0 0.0
        %1697 = vmatprep.subr.mxu0 0.0
        %1698 = vmatpush1.msra.mxu0 0.0
        %1699 = vmatprep.subr.mxu0 0.0
        %1700 = vmatpush1.msra.mxu0 0.0
        %1701 = vmatprep.subr.mxu0 0.0
        %1702 = vmatpush1.msra.mxu0 0.0
        %1703 = vmatprep.subr.mxu0 0.0
        %1704 = vmatpush1.msra.mxu0 0.0
        %1705 = vmatprep.subr.mxu0 0.0
        %1706 = vmatpush1.msra.mxu0 0.0
        %1707 = vmatprep.subr.mxu0 0.0
        %1708 = vmatpush1.msra.mxu0 0.0
        %1709 = vmatprep.subr.mxu0 0.0
        %1710 = vmatpush1.msra.mxu0 0.0
        %1711 = vmatprep.subr.mxu0 0.0
        %1712 = vmatpush1.msra.mxu0 0.0
        %1713 = vmatprep.subr.mxu0 0.0
        %1714 = vmatpush1.msra.mxu0 0.0
        %1715 = vmatprep.subr.mxu0 0.0
        %1716 = vmatpush1.msra.mxu0 0.0
        %1717 = vmatprep.subr.mxu0 0.0
        %1718 = vmatpush1.msra.mxu0 0.0
        %1719 = vmatprep.subr.mxu0 0.0
        %1720 = vmatpush1.msra.mxu0 0.0
        %1721 = vmatprep.subr.mxu0 0.0
        %1722 = vmatpush1.msra.mxu0 0.0
        %1723 = vmatprep.subr.mxu0 0.0
        %1724 = vmatpush1.msra.mxu0 0.0
        %1725 = vmatprep.mubr.f32.mxu0 0.0
        %1726 = vmatmul.mubr.f32.gmra.mrb[0].mxu0 %v1659
        %v1727 = vpop.f32.mrb[0].mxu0
        %v1728 = vadd.f32 0.0, %v1727
        %v1729 = vpop.f32.mrb[0].mxu0
        %1730 = vdwg.mxu0
        %v1731 = vadd.f32 %v1277, %v1728
        %s1732 = scalar_lea.vmem %s316, 24 [#allocation2]
        %v1733 = vld [vmem:[%s1732] sm:$0xff]
        %v1735 = vsel %vm376, %v1733, 0
        %1737 = vmatprep.subr.mxu0 0.0
        %1738 = vmatpush1.msra.mxu0 %v375
        %1739 = vmatprep.subr.mxu0 0.0
        %1740 = vmatpush1.msra.mxu0 0.0
        %1741 = vmatprep.subr.mxu0 0.0
        %1742 = vmatpush1.msra.mxu0 0.0
        %1743 = vmatprep.subr.mxu0 0.0
        %1744 = vmatpush1.msra.mxu0 0.0
        %1745 = vmatprep.subr.mxu0 0.0
        %1746 = vmatpush1.msra.mxu0 0.0
        %1747 = vmatprep.subr.mxu0 0.0
        %1748 = vmatpush1.msra.mxu0 0.0
        %1749 = vmatprep.subr.mxu0 0.0
        %1750 = vmatpush1.msra.mxu0 0.0
        %1751 = vmatprep.subr.mxu0 0.0
        %1752 = vmatpush1.msra.mxu0 0.0
        %1753 = vmatprep.subr.mxu0 0.0
        %1754 = vmatpush1.msra.mxu0 0.0
        %1755 = vmatprep.subr.mxu0 0.0
        %1756 = vmatpush1.msra.mxu0 0.0
        %1757 = vmatprep.subr.mxu0 0.0
        %1758 = vmatpush1.msra.mxu0 0.0
        %1759 = vmatprep.subr.mxu0 0.0
        %1760 = vmatpush1.msra.mxu0 0.0
        %1761 = vmatprep.subr.mxu0 0.0
        %1762 = vmatpush1.msra.mxu0 0.0
        %1763 = vmatprep.subr.mxu0 0.0
        %1764 = vmatpush1.msra.mxu0 0.0
        %1765 = vmatprep.subr.mxu0 0.0
        %1766 = vmatpush1.msra.mxu0 0.0
        %1767 = vmatprep.subr.mxu0 0.0
        %1768 = vmatpush1.msra.mxu0 0.0
        %1769 = vmatprep.subr.mxu0 0.0
        %1770 = vmatpush1.msra.mxu0 0.0
        %1771 = vmatprep.subr.mxu0 0.0
        %1772 = vmatpush1.msra.mxu0 0.0
        %1773 = vmatprep.subr.mxu0 0.0
        %1774 = vmatpush1.msra.mxu0 0.0
        %1775 = vmatprep.subr.mxu0 0.0
        %1776 = vmatpush1.msra.mxu0 0.0
        %1777 = vmatprep.subr.mxu0 0.0
        %1778 = vmatpush1.msra.mxu0 0.0
        %1779 = vmatprep.subr.mxu0 0.0
        %1780 = vmatpush1.msra.mxu0 0.0
        %1781 = vmatprep.subr.mxu0 0.0
        %1782 = vmatpush1.msra.mxu0 0.0
        %1783 = vmatprep.subr.mxu0 0.0
        %1784 = vmatpush1.msra.mxu0 0.0
        %1785 = vmatprep.subr.mxu0 0.0
        %1786 = vmatpush1.msra.mxu0 0.0
        %1787 = vmatprep.subr.mxu0 0.0
        %1788 = vmatpush1.msra.mxu0 0.0
        %1789 = vmatprep.subr.mxu0 0.0
        %1790 = vmatpush1.msra.mxu0 0.0
        %1791 = vmatprep.subr.mxu0 0.0
        %1792 = vmatpush1.msra.mxu0 0.0
        %1793 = vmatprep.subr.mxu0 0.0
        %1794 = vmatpush1.msra.mxu0 0.0
        %1795 = vmatprep.subr.mxu0 0.0
        %1796 = vmatpush1.msra.mxu0 0.0
        %1797 = vmatprep.subr.mxu0 0.0
        %1798 = vmatpush1.msra.mxu0 0.0
        %1799 = vmatprep.subr.mxu0 0.0
        %1800 = vmatpush1.msra.mxu0 0.0
        %1801 = vmatprep.mubr.f32.mxu0 0.0
        %1802 = vmatmul.mubr.f32.gmra.mrb[0].mxu0 %v1735
        %v1803 = vpop.f32.mrb[0].mxu0
        %v1804 = vadd.f32 0.0, %v1803
        %v1805 = vpop.f32.mrb[0].mxu0
        %1806 = vdwg.mxu0
        %1807 = vmatprep.subr.mxu0 0.0
        %1808 = vmatpush1.msra.mxu0 %v450
        %1809 = vmatprep.subr.mxu0 0.0
        %1810 = vmatpush1.msra.mxu0 0.0
        %1811 = vmatprep.subr.mxu0 0.0
        %1812 = vmatpush1.msra.mxu0 0.0
        %1813 = vmatprep.subr.mxu0 0.0
        %1814 = vmatpush1.msra.mxu0 0.0
        %1815 = vmatprep.subr.mxu0 0.0
        %1816 = vmatpush1.msra.mxu0 0.0
        %1817 = vmatprep.subr.mxu0 0.0
        %1818 = vmatpush1.msra.mxu0 0.0
        %1819 = vmatprep.subr.mxu0 0.0
        %1820 = vmatpush1.msra.mxu0 0.0
        %1821 = vmatprep.subr.mxu0 0.0
        %1822 = vmatpush1.msra.mxu0 0.0
        %1823 = vmatprep.subr.mxu0 0.0
        %1824 = vmatpush1.msra.mxu0 0.0
        %1825 = vmatprep.subr.mxu0 0.0
        %1826 = vmatpush1.msra.mxu0 0.0
        %1827 = vmatprep.subr.mxu0 0.0
        %1828 = vmatpush1.msra.mxu0 0.0
        %1829 = vmatprep.subr.mxu0 0.0
        %1830 = vmatpush1.msra.mxu0 0.0
        %1831 = vmatprep.subr.mxu0 0.0
        %1832 = vmatpush1.msra.mxu0 0.0
        %1833 = vmatprep.subr.mxu0 0.0
        %1834 = vmatpush1.msra.mxu0 0.0
        %1835 = vmatprep.subr.mxu0 0.0
        %1836 = vmatpush1.msra.mxu0 0.0
        %1837 = vmatprep.subr.mxu0 0.0
        %1838 = vmatpush1.msra.mxu0 0.0
        %1839 = vmatprep.subr.mxu0 0.0
        %1840 = vmatpush1.msra.mxu0 0.0
        %1841 = vmatprep.subr.mxu0 0.0
        %1842 = vmatpush1.msra.mxu0 0.0
        %1843 = vmatprep.subr.mxu0 0.0
        %1844 = vmatpush1.msra.mxu0 0.0
        %1845 = vmatprep.subr.mxu0 0.0
        %1846 = vmatpush1.msra.mxu0 0.0
        %1847 = vmatprep.subr.mxu0 0.0
        %1848 = vmatpush1.msra.mxu0 0.0
        %1849 = vmatprep.subr.mxu0 0.0
        %1850 = vmatpush1.msra.mxu0 0.0
        %1851 = vmatprep.subr.mxu0 0.0
        %1852 = vmatpush1.msra.mxu0 0.0
        %1853 = vmatprep.subr.mxu0 0.0
        %1854 = vmatpush1.msra.mxu0 0.0
        %1855 = vmatprep.subr.mxu0 0.0
        %1856 = vmatpush1.msra.mxu0 0.0
        %1857 = vmatprep.subr.mxu0 0.0
        %1858 = vmatpush1.msra.mxu0 0.0
        %1859 = vmatprep.subr.mxu0 0.0
        %1860 = vmatpush1.msra.mxu0 0.0
        %1861 = vmatprep.subr.mxu0 0.0
        %1862 = vmatpush1.msra.mxu0 0.0
        %1863 = vmatprep.subr.mxu0 0.0
        %1864 = vmatpush1.msra.mxu0 0.0
        %1865 = vmatprep.subr.mxu0 0.0
        %1866 = vmatpush1.msra.mxu0 0.0
        %1867 = vmatprep.subr.mxu0 0.0
        %1868 = vmatpush1.msra.mxu0 0.0
        %1869 = vmatprep.subr.mxu0 0.0
        %1870 = vmatpush1.msra.mxu0 0.0
        %1871 = vmatprep.mubr.f32.mxu0 0.0
        %1872 = vmatmul.mubr.f32.gmra.mrb[0].mxu0 %v1735
        %v1873 = vpop.f32.mrb[0].mxu0
        %v1874 = vadd.f32 0.0, %v1873
        %v1875 = vpop.f32.mrb[0].mxu0
        %1876 = vdwg.mxu0
        %1877 = vmatprep.subr.mxu0 0.0
        %1878 = vmatpush1.msra.mxu0 %v521
        %1879 = vmatprep.subr.mxu0 0.0
        %1880 = vmatpush1.msra.mxu0 0.0
        %1881 = vmatprep.subr.mxu0 0.0
        %1882 = vmatpush1.msra.mxu0 0.0
        %1883 = vmatprep.subr.mxu0 0.0
        %1884 = vmatpush1.msra.mxu0 0.0
        %1885 = vmatprep.subr.mxu0 0.0
        %1886 = vmatpush1.msra.mxu0 0.0
        %1887 = vmatprep.subr.mxu0 0.0
        %1888 = vmatpush1.msra.mxu0 0.0
        %1889 = vmatprep.subr.mxu0 0.0
        %1890 = vmatpush1.msra.mxu0 0.0
        %1891 = vmatprep.subr.mxu0 0.0
        %1892 = vmatpush1.msra.mxu0 0.0
        %1893 = vmatprep.subr.mxu0 0.0
        %1894 = vmatpush1.msra.mxu0 0.0
        %1895 = vmatprep.subr.mxu0 0.0
        %1896 = vmatpush1.msra.mxu0 0.0
        %1897 = vmatprep.subr.mxu0 0.0
        %1898 = vmatpush1.msra.mxu0 0.0
        %1899 = vmatprep.subr.mxu0 0.0
        %1900 = vmatpush1.msra.mxu0 0.0
        %1901 = vmatprep.subr.mxu0 0.0
        %1902 = vmatpush1.msra.mxu0 0.0
        %1903 = vmatprep.subr.mxu0 0.0
        %1904 = vmatpush1.msra.mxu0 0.0
        %1905 = vmatprep.subr.mxu0 0.0
        %1906 = vmatpush1.msra.mxu0 0.0
        %1907 = vmatprep.subr.mxu0 0.0
        %1908 = vmatpush1.msra.mxu0 0.0
        %1909 = vmatprep.subr.mxu0 0.0
        %1910 = vmatpush1.msra.mxu0 0.0
        %1911 = vmatprep.subr.mxu0 0.0
        %1912 = vmatpush1.msra.mxu0 0.0
        %1913 = vmatprep.subr.mxu0 0.0
        %1914 = vmatpush1.msra.mxu0 0.0
        %1915 = vmatprep.subr.mxu0 0.0
        %1916 = vmatpush1.msra.mxu0 0.0
        %1917 = vmatprep.subr.mxu0 0.0
        %1918 = vmatpush1.msra.mxu0 0.0
        %1919 = vmatprep.subr.mxu0 0.0
        %1920 = vmatpush1.msra.mxu0 0.0
        %1921 = vmatprep.subr.mxu0 0.0
        %1922 = vmatpush1.msra.mxu0 0.0
        %1923 = vmatprep.subr.mxu0 0.0
        %1924 = vmatpush1.msra.mxu0 0.0
        %1925 = vmatprep.subr.mxu0 0.0
        %1926 = vmatpush1.msra.mxu0 0.0
        %1927 = vmatprep.subr.mxu0 0.0
        %1928 = vmatpush1.msra.mxu0 0.0
        %1929 = vmatprep.subr.mxu0 0.0
        %1930 = vmatpush1.msra.mxu0 0.0
        %1931 = vmatprep.subr.mxu0 0.0
        %1932 = vmatpush1.msra.mxu0 0.0
        %1933 = vmatprep.subr.mxu0 0.0
        %1934 = vmatpush1.msra.mxu0 0.0
        %1935 = vmatprep.subr.mxu0 0.0
        %1936 = vmatpush1.msra.mxu0 0.0
        %1937 = vmatprep.subr.mxu0 0.0
        %1938 = vmatpush1.msra.mxu0 0.0
        %1939 = vmatprep.subr.mxu0 0.0
        %1940 = vmatpush1.msra.mxu0 0.0
        %1941 = vmatprep.mubr.f32.mxu0 0.0
        %1942 = vmatmul.mubr.f32.gmra.mrb[0].mxu0 %v1735
        %v1943 = vpop.f32.mrb[0].mxu0
        %v1944 = vadd.f32 0.0, %v1943
        %v1945 = vpop.f32.mrb[0].mxu0
        %1946 = vdwg.mxu0
        %v1948 = vsel %vm376, %v1804, 0
        %v1951 = vsel %vm376, %v1874, 0
        %1953 = vmatprep.subr.mxu0 0.0
        %1954 = vmatpush1.xpose.msra.mxu0 %v1951
        %1955 = vmatprep.subr.mxu0 0.0
        %1956 = vmatpush1.xpose.msra.mxu0 0.0
        %1957 = vmatprep.subr.mxu0 0.0
        %1958 = vmatpush1.xpose.msra.mxu0 0.0
        %1959 = vmatprep.subr.mxu0 0.0
        %1960 = vmatpush1.xpose.msra.mxu0 0.0
        %1961 = vmatprep.subr.mxu0 0.0
        %1962 = vmatpush1.xpose.msra.mxu0 0.0
        %1963 = vmatprep.subr.mxu0 0.0
        %1964 = vmatpush1.xpose.msra.mxu0 0.0
        %1965 = vmatprep.subr.mxu0 0.0
        %1966 = vmatpush1.xpose.msra.mxu0 0.0
        %1967 = vmatprep.subr.mxu0 0.0
        %1968 = vmatpush1.xpose.msra.mxu0 0.0
        %1969 = vmatprep.subr.mxu0 0.0
        %1970 = vmatpush1.xpose.msra.mxu0 0.0
        %1971 = vmatprep.subr.mxu0 0.0
        %1972 = vmatpush1.xpose.msra.mxu0 0.0
        %1973 = vmatprep.subr.mxu0 0.0
        %1974 = vmatpush1.xpose.msra.mxu0 0.0
        %1975 = vmatprep.subr.mxu0 0.0
        %1976 = vmatpush1.xpose.msra.mxu0 0.0
        %1977 = vmatprep.subr.mxu0 0.0
        %1978 = vmatpush1.xpose.msra.mxu0 0.0
        %1979 = vmatprep.subr.mxu0 0.0
        %1980 = vmatpush1.xpose.msra.mxu0 0.0
        %1981 = vmatprep.subr.mxu0 0.0
        %1982 = vmatpush1.xpose.msra.mxu0 0.0
        %1983 = vmatprep.subr.mxu0 0.0
        %1984 = vmatpush1.xpose.msra.mxu0 0.0
        %1985 = vmatprep.subr.mxu0 0.0
        %1986 = vmatpush1.xpose.msra.mxu0 0.0
        %1987 = vmatprep.subr.mxu0 0.0
        %1988 = vmatpush1.xpose.msra.mxu0 0.0
        %1989 = vmatprep.subr.mxu0 0.0
        %1990 = vmatpush1.xpose.msra.mxu0 0.0
        %1991 = vmatprep.subr.mxu0 0.0
        %1992 = vmatpush1.xpose.msra.mxu0 0.0
        %1993 = vmatprep.subr.mxu0 0.0
        %1994 = vmatpush1.xpose.msra.mxu0 0.0
        %1995 = vmatprep.subr.mxu0 0.0
        %1996 = vmatpush1.xpose.msra.mxu0 0.0
        %1997 = vmatprep.subr.mxu0 0.0
        %1998 = vmatpush1.xpose.msra.mxu0 0.0
        %1999 = vmatprep.subr.mxu0 0.0
        %2000 = vmatpush1.xpose.msra.mxu0 0.0
        %2001 = vmatprep.subr.mxu0 0.0
        %2002 = vmatpush1.xpose.msra.mxu0 0.0
        %2003 = vmatprep.subr.mxu0 0.0
        %2004 = vmatpush1.xpose.msra.mxu0 0.0
        %2005 = vmatprep.subr.mxu0 0.0
        %2006 = vmatpush1.xpose.msra.mxu0 0.0
        %2007 = vmatprep.subr.mxu0 0.0
        %2008 = vmatpush1.xpose.msra.mxu0 0.0
        %2009 = vmatprep.subr.mxu0 0.0
        %2010 = vmatpush1.xpose.msra.mxu0 0.0
        %2011 = vmatprep.subr.mxu0 0.0
        %2012 = vmatpush1.xpose.msra.mxu0 0.0
        %2013 = vmatprep.subr.mxu0 0.0
        %2014 = vmatpush1.xpose.msra.mxu0 0.0
        %2015 = vmatprep.subr.mxu0 0.0
        %2016 = vmatpush1.xpose.msra.mxu0 0.0
        %2017 = vmatprep.mubr.f32.mxu0 0.0
        %2018 = vmatmul.mubr.f32.gmra.mrb[0].mxu0 %v1948
        %v2019 = vpop.f32.mrb[0].mxu0
        %v2020 = vadd.f32 0.0, %v2019
        %v2021 = vpop.f32.mrb[0].mxu0
        %2022 = vdwg.mxu0
        %v2023 = vsel %vm668, -1e+20, %v2020
        %v2024 = vmul.f32 %v2023, 0.17677669
        %v2025 = vsel %vm376, %v2024, -inf
        %2026 = vmax.xlane.f32.xlu0 %v2025
        %v2027 = vpop.xlane.xlu0 %2026
        %v2028 = vsub.f32 %v2024, %v2027
        %v2029 = vmul.f32 %v2028, 1.442695
        %v2030 = vpow.pop %v2029
        %v2031 = vsel %vm376, %v2030, 0.0
        %2032 = vadd.xlane.f32.xlu0 %v2031
        %v2033 = vpop.xlane.xlu0 %2032
        %v2034 = vrcp.pop %v2033
        %v2035 = vmul.f32 %v2030, %v2034
        %v2037 = vsel %vm376, %v2035, 0
        %2039 = vmatprep.subr.mxu0 0.0
        %2040 = vmatpush1.msra.mxu0 %v1944
        %2041 = vmatprep.subr.mxu0 0.0
        %2042 = vmatpush1.msra.mxu0 0.0
        %2043 = vmatprep.subr.mxu0 0.0
        %2044 = vmatpush1.msra.mxu0 0.0
        %2045 = vmatprep.subr.mxu0 0.0
        %2046 = vmatpush1.msra.mxu0 0.0
        %2047 = vmatprep.subr.mxu0 0.0
        %2048 = vmatpush1.msra.mxu0 0.0
        %2049 = vmatprep.subr.mxu0 0.0
        %2050 = vmatpush1.msra.mxu0 0.0
        %2051 = vmatprep.subr.mxu0 0.0
        %2052 = vmatpush1.msra.mxu0 0.0
        %2053 = vmatprep.subr.mxu0 0.0
        %2054 = vmatpush1.msra.mxu0 0.0
        %2055 = vmatprep.subr.mxu0 0.0
        %2056 = vmatpush1.msra.mxu0 0.0
        %2057 = vmatprep.subr.mxu0 0.0
        %2058 = vmatpush1.msra.mxu0 0.0
        %2059 = vmatprep.subr.mxu0 0.0
        %2060 = vmatpush1.msra.mxu0 0.0
        %2061 = vmatprep.subr.mxu0 0.0
        %2062 = vmatpush1.msra.mxu0 0.0
        %2063 = vmatprep.subr.mxu0 0.0
        %2064 = vmatpush1.msra.mxu0 0.0
        %2065 = vmatprep.subr.mxu0 0.0
        %2066 = vmatpush1.msra.mxu0 0.0
        %2067 = vmatprep.subr.mxu0 0.0
        %2068 = vmatpush1.msra.mxu0 0.0
        %2069 = vmatprep.subr.mxu0 0.0
        %2070 = vmatpush1.msra.mxu0 0.0
        %2071 = vmatprep.subr.mxu0 0.0
        %2072 = vmatpush1.msra.mxu0 0.0
        %2073 = vmatprep.subr.mxu0 0.0
        %2074 = vmatpush1.msra.mxu0 0.0
        %2075 = vmatprep.subr.mxu0 0.0
        %2076 = vmatpush1.msra.mxu0 0.0
        %2077 = vmatprep.subr.mxu0 0.0
        %2078 = vmatpush1.msra.mxu0 0.0
        %2079 = vmatprep.subr.mxu0 0.0
        %2080 = vmatpush1.msra.mxu0 0.0
        %2081 = vmatprep.subr.mxu0 0.0
        %2082 = vmatpush1.msra.mxu0 0.0
        %2083 = vmatprep.subr.mxu0 0.0
        %2084 = vmatpush1.msra.mxu0 0.0
        %2085 = vmatprep.subr.mxu0 0.0
        %2086 = vmatpush1.msra.mxu0 0.0
        %2087 = vmatprep.subr.mxu0 0.0
        %2088 = vmatpush1.msra.mxu0 0.0
        %2089 = vmatprep.subr.mxu0 0.0
        %2090 = vmatpush1.msra.mxu0 0.0
        %2091 = vmatprep.subr.mxu0 0.0
        %2092 = vmatpush1.msra.mxu0 0.0
        %2093 = vmatprep.subr.mxu0 0.0
        %2094 = vmatpush1.msra.mxu0 0.0
        %2095 = vmatprep.subr.mxu0 0.0
        %2096 = vmatpush1.msra.mxu0 0.0
        %2097 = vmatprep.subr.mxu0 0.0
        %2098 = vmatpush1.msra.mxu0 0.0
        %2099 = vmatprep.subr.mxu0 0.0
        %2100 = vmatpush1.msra.mxu0 0.0
        %2101 = vmatprep.subr.mxu0 0.0
        %2102 = vmatpush1.msra.mxu0 0.0
        %2103 = vmatprep.mubr.f32.mxu0 0.0
        %2104 = vmatmul.mubr.f32.gmra.mrb[0].mxu0 %v2037
        %v2105 = vpop.f32.mrb[0].mxu0
        %v2106 = vadd.f32 0.0, %v2105
        %v2107 = vpop.f32.mrb[0].mxu0
        %2108 = vdwg.mxu0
        %v2109 = vld [vmem:[#allocation10 + $0x18] sm:$0xff]
        %v2111 = vsel %vm376, %v2106, 0
        %2113 = vmatprep.subr.mxu0 0.0
        %2114 = vmatpush1.msra.mxu0 %v2109
        %2115 = vmatprep.subr.mxu0 0.0
        %2116 = vmatpush1.msra.mxu0 0.0
        %2117 = vmatprep.subr.mxu0 0.0
        %2118 = vmatpush1.msra.mxu0 0.0
        %2119 = vmatprep.subr.mxu0 0.0
        %2120 = vmatpush1.msra.mxu0 0.0
        %2121 = vmatprep.subr.mxu0 0.0
        %2122 = vmatpush1.msra.mxu0 0.0
        %2123 = vmatprep.subr.mxu0 0.0
        %2124 = vmatpush1.msra.mxu0 0.0
        %2125 = vmatprep.subr.mxu0 0.0
        %2126 = vmatpush1.msra.mxu0 0.0
        %2127 = vmatprep.subr.mxu0 0.0
        %2128 = vmatpush1.msra.mxu0 0.0
        %2129 = vmatprep.subr.mxu0 0.0
        %2130 = vmatpush1.msra.mxu0 0.0
        %2131 = vmatprep.subr.mxu0 0.0
        %2132 = vmatpush1.msra.mxu0 0.0
        %2133 = vmatprep.subr.mxu0 0.0
        %2134 = vmatpush1.msra.mxu0 0.0
        %2135 = vmatprep.subr.mxu0 0.0
        %2136 = vmatpush1.msra.mxu0 0.0
        %2137 = vmatprep.subr.mxu0 0.0
        %2138 = vmatpush1.msra.mxu0 0.0
        %2139 = vmatprep.subr.mxu0 0.0
        %2140 = vmatpush1.msra.mxu0 0.0
        %2141 = vmatprep.subr.mxu0 0.0
        %2142 = vmatpush1.msra.mxu0 0.0
        %2143 = vmatprep.subr.mxu0 0.0
        %2144 = vmatpush1.msra.mxu0 0.0
        %2145 = vmatprep.subr.mxu0 0.0
        %2146 = vmatpush1.msra.mxu0 0.0
        %2147 = vmatprep.subr.mxu0 0.0
        %2148 = vmatpush1.msra.mxu0 0.0
        %2149 = vmatprep.subr.mxu0 0.0
        %2150 = vmatpush1.msra.mxu0 0.0
        %2151 = vmatprep.subr.mxu0 0.0
        %2152 = vmatpush1.msra.mxu0 0.0
        %2153 = vmatprep.subr.mxu0 0.0
        %2154 = vmatpush1.msra.mxu0 0.0
        %2155 = vmatprep.subr.mxu0 0.0
        %2156 = vmatpush1.msra.mxu0 0.0
        %2157 = vmatprep.subr.mxu0 0.0
        %2158 = vmatpush1.msra.mxu0 0.0
        %2159 = vmatprep.subr.mxu0 0.0
        %2160 = vmatpush1.msra.mxu0 0.0
        %2161 = vmatprep.subr.mxu0 0.0
        %2162 = vmatpush1.msra.mxu0 0.0
        %2163 = vmatprep.subr.mxu0 0.0
        %2164 = vmatpush1.msra.mxu0 0.0
        %2165 = vmatprep.subr.mxu0 0.0
        %2166 = vmatpush1.msra.mxu0 0.0
        %2167 = vmatprep.subr.mxu0 0.0
        %2168 = vmatpush1.msra.mxu0 0.0
        %2169 = vmatprep.subr.mxu0 0.0
        %2170 = vmatpush1.msra.mxu0 0.0
        %2171 = vmatprep.subr.mxu0 0.0
        %2172 = vmatpush1.msra.mxu0 0.0
        %2173 = vmatprep.subr.mxu0 0.0
        %2174 = vmatpush1.msra.mxu0 0.0
        %2175 = vmatprep.subr.mxu0 0.0
        %2176 = vmatpush1.msra.mxu0 0.0
        %2177 = vmatprep.mubr.f32.mxu0 0.0
        %2178 = vmatmul.mubr.f32.gmra.mrb[0].mxu0 %v2111
        %v2179 = vpop.f32.mrb[0].mxu0
        %v2180 = vadd.f32 0.0, %v2179
        %v2181 = vpop.f32.mrb[0].mxu0
        %2182 = vdwg.mxu0
        %v2183 = vadd.f32 %v1731, %v2180
        %v2184 = vld [vmem:[%s6] sm:$0x1]
        %v2186 = vlaneseq
        %v2187 = vshrl.u32 %v2186, 7
        %v2188 = vsub.s32 0, %v2187
        %v2189 = vrot.slane %v2184, %v2188
        %v2191 = vadd.f32 %v2183, %v2189
        %vm2192 = vcmask 261120
        %2193 = vst.msk [vmem:[%s372] sm:$0xff] %vm2192, %v2191
        %s2194 = sand.u32 %s193, 1
        %s2195 = scalar_lea.sflag [#allocation4], %s2194
        %s2196 = sand.u32 %s193, 1
        %s2197 = smul.addr %s2196, 8
        %s2198 = scalar_lea.vmem [#allocation11], %s2197
        // Predicated region
        $region69: #{tpu_custom_call.1} parent=47 // pred_check
          %p2199 = pneg %p203
        $region70: #{tpu_custom_call.1} parent=47 // pred_check_branch
          %2201 = sbr.rel (%p2199) target = $region72
        $region71: #{tpu_custom_call.1} parent=47 // pred_region
          %s2203 = ssub.s32 128, 128
          %2204 = vsyncadd %s2195, %s2203
          %s2205 = smul.addr %s28, 128
          %s2206 = scalar_lea.hbm %s7, %s2205
          %s2208 = sshll.u32 %s2198, 4
          %s2209 = int_to_ptr.vmem [resolvable:$true] %s2208
          %2211 = dma.vmem_to_hbm [thread:$0]  %s2209, 128, %s2206, %s2195
        $region72: #{tpu_custom_call.1} parent=47 // pred_fallthru
          _
      $region48: #{tpu_custom_call.1} parent=5 // pred_fallthru
        _
      %p2212 = scmp.le.s32.totalorder 2, %s23
      // Predicated region
      $region73: #{tpu_custom_call.1} parent=5 // pred_check
        %p2213 = pneg %p2212
      $region74: #{tpu_custom_call.1} parent=5 // pred_check_branch
        %2215 = sbr.rel (%p2213) target = $region76
      $region75: #{tpu_custom_call.1} parent=5 // pred_region
        %s2216 = ssub.s32 %s23, 2
        // Predicated region
        $region77: #{tpu_custom_call.1} parent=75 // pred_check
          %p2217 = pneg %p209
        $region78: #{tpu_custom_call.1} parent=75 // pred_check_branch
          %2219 = sbr.rel (%p2217) target = $region80
        $region79: #{tpu_custom_call.1} parent=75 // pred_region
          %s2220 = sand.u32 %s194, 1
          %s2221 = scalar_lea.sflag [#allocation4], %s2220
          %s2222 = sand.u32 %s194, 1
          %s2223 = smul.addr %s2222, 8
          %s2224 = scalar_lea.vmem [#allocation11], %s2223
          %2225 = dma.done %s2221, 128
        $region80: #{tpu_custom_call.1} parent=75 // pred_fallthru
          _
      $region76: #{tpu_custom_call.1} parent=5 // pred_fallthru
        _
    $region6: #{tpu_custom_call.1} parent=1 // loop_footer
      %s27 = sadd.s32 1, %s23
    $region7: #{tpu_custom_call.1} parent=1 // loop_footer_branch
      %22 = sbr.rel target = $region3
    $region8: #{tpu_custom_call.1} parent=1 // loop_exit
      _
    %2226 = vsyncpa [#allocation3], 1
    %s2227 = scalar_lea.sflag [#allocation3], 1
    %2228 = vsyncpa %s2227, 1
    %2229 = vsyncpa [#allocation6], 1
    %s2230 = scalar_lea.sflag [#allocation6], 1
    %2231 = vsyncpa %s2230, 1
    %2232 = vsyncpa [#allocation9], 1
    %2233 = vsyncpa [#allocation4], 1
    %s2234 = scalar_lea.sflag [#allocation4], 1
    %2235 = vsyncpa %s2234, 1

</llo_original>
